<compile_context>
chip_gen: v6e
topology: v6e:2x2x1
jax: 0.10.0
libtpu: 0.0.40
codegen_flags: <defaults>
</compile_context>

<pallas_src>
import functools
import math

import jax
import jax.numpy as jnp
from jax import lax
from jax.experimental import pallas as pl
from jax.experimental.pallas import tpu as pltpu


def _round_up(x, m):
    return (x + m - 1) // m * m


def _detect_buffered():
    # Multi-buffering of the streamed B matrix (weights) for long-K matmuls.
    if not hasattr(pl, "Buffered"):
        return False
    try:
        pl.BlockSpec((8, 128), lambda i: (i, 0), pipeline_mode=pl.Buffered(3))
        return True
    except TypeError:
        return False


_HAS_BUFFERED = _detect_buffered()


# ----------------------------------------------------------------------------
# Fused matmul + bias + activation Pallas kernel (bf16 operands -> MXU, f32 acc)
# ----------------------------------------------------------------------------
def _make_matmul_kernel(act):
    def kernel(a_ref, b_ref, bias_ref, o_ref, acc_ref):
        @pl.when(pl.program_id(2) == 0)
        def _():
            acc_ref[...] = jnp.zeros_like(acc_ref)

        acc_ref[...] += jnp.dot(a_ref[...], b_ref[...],
                                preferred_element_type=jnp.float32)

        @pl.when(pl.program_id(2) == pl.num_programs(2) - 1)
        def _():
            r = acc_ref[...] + bias_ref[...]        # epilogue math stays f32 (v5e friendly)
            if act == "relu":
                r = jnp.maximum(r, 0.0)
            elif act == "sigmoid":
                r = jax.nn.sigmoid(r)
            o_ref[...] = r.astype(o_ref.dtype)      # cast only at the store

    return kernel


@functools.lru_cache(maxsize=None)
def _matmul_fn(Mp, Kp, Np, tm, tn, tk, act, op_dtype_name, out_dtype_name):
    del op_dtype_name  # jit specialises on input avals; kept in the key for clarity
    kernel = _make_matmul_kernel(act)
    grid = (Mp // tm, Np // tn, Kp // tk)
    b_kwargs = {}
    if _HAS_BUFFERED and grid[2] >= 4:
        # long K loop with trivial per-step compute: keep the B (weight) DMA queue full
        b_kwargs["pipeline_mode"] = pl.Buffered(3)
    f = pl.pallas_call(
        kernel,
        out_shape=jax.ShapeDtypeStruct((Mp, Np), jnp.dtype(out_dtype_name)),
        grid_spec=pltpu.PrefetchScalarGridSpec(
            num_scalar_prefetch=0,
            grid=grid,
            in_specs=[
                pl.BlockSpec((tm, tk), lambda i, j, k: (i, k)),
                pl.BlockSpec((tk, tn), lambda i, j, k: (k, j), **b_kwargs),
                pl.BlockSpec((1, tn), lambda i, j, k: (0, j)),
            ],
            out_specs=pl.BlockSpec((tm, tn), lambda i, j, k: (i, j)),
            scratch_shapes=[pltpu.VMEM((tm, tn), jnp.float32)],
        ),
        compiler_params=pltpu.CompilerParams(
            dimension_semantics=("parallel", "parallel", "arbitrary")),
    )
    return jax.jit(f)


def _pick_tiles(M, K, N):
    # M tile: multiple of 16 (bf16 sublane packing), capped at 512, low-waste.
    if M <= 512:
        tm = _round_up(M, 16)
        Mp = tm
    else:
        tm, Mp = 128, _round_up(M, 128)
        for cand in (512, 256, 128):
            Mp_c = _round_up(M, cand)
            if Mp_c - M <= max(M // 8, 64):
                tm, Mp = cand, Mp_c
                break
    # K: keep whole (single VMEM block, zero padding waste) when it fits; otherwise
    # pick the largest tile dividing the 128-aligned K so padded MXU work stays ~0.
    if K <= 2048:
        Kp = _round_up(K, 16)
        tk = Kp
    else:
        Kp = _round_up(K, 128)
        tk = 128
        for cand in (2048, 1024, 512, 256, 128):
            if Kp % cand == 0:
                tk = cand
                break
    # N: never pad small Cout (32 / 6 / 1 / Wo) up to 128 — full-dim blocks are legal.
    # TODO(synk): for Cout=32 a lane-dense store (folding 4 spatial rows into lanes) would
    #             remove the masked vst.msk partial stores on v6e/v7x; left out for now.
    if N <= 256:
        Np, tn = N, N
    else:
        Np = _round_up(N, 128)
        tn = 256 if Np % 256 == 0 else 128
    return Mp, Kp, Np, tm, tk, tn


def matmul_bias_act(a, b, bias, act="none", compute_dtype=jnp.bfloat16,
                    out_dtype=jnp.float32):
    """(M,K) @ (K,N) + bias[N], then activation — Pallas/MXU, f32 accumulation."""
    M, K = a.shape
    _, N = b.shape
    Mp, Kp, Np, tm, tk, tn = _pick_tiles(M, K, N)
    a = a.astype(compute_dtype)
    b = b.astype(compute_dtype)
    if Mp != M or Kp != K:
        a = jnp.pad(a, ((0, Mp - M), (0, Kp - K)))
    if Kp != K or Np != N:
        b = jnp.pad(b, ((0, Kp - K), (0, Np - N)))
    bias2 = bias.reshape(1, N).astype(jnp.float32)
    if Np != N:
        bias2 = jnp.pad(bias2, ((0, 0), (0, Np - N)))
    out = _matmul_fn(Mp, Kp, Np, tm, tn, tk, act,
                     jnp.dtype(compute_dtype).name,
                     jnp.dtype(out_dtype).name)(a, b, bias2)
    if Mp != M:
        out = out[:M]
    if Np != N:
        out = out[:, :N]
    return out


# ----------------------------------------------------------------------------
# Conv2d = patch extraction (glue) + fused Pallas matmul
# ----------------------------------------------------------------------------
def conv2d(x, w, b=None, stride=1, padding=0, act="none", out_dtype=jnp.bfloat16):
    """x: (N,H,W,Cin) NHWC ; w: (KH,KW,Cin,Cout) ; b: (Cout,) or None."""
    N, H, W, Cin = x.shape
    KH, KW, _, Cout = w.shape
    x = x.astype(jnp.bfloat16)          # bf16 operands: halves patch/HBM traffic
    if padding > 0:
        x = jnp.pad(x, ((0, 0), (padding, padding), (padding, padding), (0, 0)))
    Hp, Wp = x.shape[1], x.shape[2]
    Ho = (Hp - KH) // stride + 1
    Wo = (Wp - KW) // stride + 1
    if KH == 1 and KW == 1:
        patches = x[:, ::stride, ::stride, :]          # pure reshape path for 1x1 convs
    else:
        # TODO(synk): direct-conv Pallas path would avoid materialising these shifted copies.
        cols = []
        for i in range(KH):
            for j in range(KW):
                cols.append(x[:, i:i + (Ho - 1) * stride + 1:stride,
                              j:j + (Wo - 1) * stride + 1:stride, :])
        patches = jnp.concatenate(cols, axis=-1)       # (N,Ho,Wo,KH*KW*Cin) bf16
    a = patches.reshape(N * Ho * Wo, KH * KW * Cin)
    bmat = w.reshape(KH * KW * Cin, Cout)
    bias = b if b is not None else jnp.zeros((Cout,), jnp.float32)
    out = matmul_bias_act(a, bmat, bias, act, out_dtype=out_dtype)
    return out.reshape(N, Ho, Wo, Cout)


# ----------------------------------------------------------------------------
# Spatial IRNN Pallas kernels (interleaved fwd/bwd directional ReLU scans)
#   - vertical kernel scans axis 1 (rows): fwd=down, bwd=up
#   - horizontal kernel scans axis 2 (cols): fwd=right, bwd=left  (NO transposes needed)
#   - bf16 I/O, f32 recurrence math; broadcasts hoisted out of the loops.
# ----------------------------------------------------------------------------
def _irnn_v_kernel(x_ref, wf_ref, bf_ref, wb_ref, bb_ref, fwd_ref, bwd_ref, *, unroll):
    H = x_ref.shape[1]
    Wt = x_ref.shape[2]
    C = x_ref.shape[3]
    wf = jnp.broadcast_to(wf_ref[...].astype(jnp.float32), (Wt, C))
    bf = jnp.broadcast_to(bf_ref[...].astype(jnp.float32), (Wt, C))
    wb = jnp.broadcast_to(wb_ref[...].astype(jnp.float32), (Wt, C))
    bb = jnp.broadcast_to(bb_ref[...].astype(jnp.float32), (Wt, C))
    zero = jnp.zeros((Wt, C), jnp.float32)

    def body(i, carry):
        hf, hb = carry                   # fwd and bwd scans are independent -> interleave
        r = H - 1 - i
        xf = x_ref[0, i, :, :].astype(jnp.float32)
        xb = x_ref[0, r, :, :].astype(jnp.float32)
        hf = jnp.maximum(xf + wf * hf + bf, 0.0)
        hb = jnp.maximum(xb + wb * hb + bb, 0.0)
        fwd_ref[0, i, :, :] = hf.astype(fwd_ref.dtype)
        bwd_ref[0, r, :, :] = hb.astype(bwd_ref.dtype)
        return hf, hb

    lax.fori_loop(0, H, body, (zero, zero), unroll=unroll)


def _irnn_h_kernel(x_ref, wf_ref, bf_ref, wb_ref, bb_ref, fwd_ref, bwd_ref):
    Ht = x_ref.shape[1]
    W = x_ref.shape[2]
    C = x_ref.shape[3]
    wf = jnp.broadcast_to(wf_ref[...].astype(jnp.float32), (Ht, C))
    bf = jnp.broadcast_to(bf_ref[...].astype(jnp.float32), (Ht, C))
    wb = jnp.broadcast_to(wb_ref[...].astype(jnp.float32), (Ht, C))
    bb = jnp.broadcast_to(bb_ref[...].astype(jnp.float32), (Ht, C))
    zero = jnp.zeros((Ht, C), jnp.float32)

    def step(j, hf, hb):
        r = W - 1 - j
        xf = x_ref[0, :, j, :].astype(jnp.float32)
        xb = x_ref[0, :, r, :].astype(jnp.float32)
        hf = jnp.maximum(xf + wf * hf + bf, 0.0)
        hb = jnp.maximum(xb + wb * hb + bb, 0.0)
        fwd_ref[0, :, j, :] = hf.astype(fwd_ref.dtype)
        bwd_ref[0, :, r, :] = hb.astype(bwd_ref.dtype)
        return hf, hb

    if W <= 128:
        # fully-unrolled static-index loop (column widths after the backbone are modest)
        hf, hb = zero, zero
        for j in range(W):
            hf, hb = step(j, hf, hb)
    else:
        def body(j, carry):
            return step(j, *carry)
        lax.fori_loop(0, W, body, (zero, zero))


def _pick_scan_tile(axis_len, per_unit_elems, sublane_constrained,
                    budget_bytes=6 * 1024 * 1024):
    """Largest legal divisor of axis_len whose (x + 2 outputs) x double-buffer bf16 blocks
    fit the VMEM budget; prefers >=2 tiles so the parallel grid axis can shard (v7x)."""
    def legal(d):
        return (not sublane_constrained) or (d % 8 == 0) or (d == axis_len)

    divs = [d for d in range(axis_len, 0, -1) if axis_len % d == 0 and legal(d)]
    fit = [d for d in divs if 12 * d * per_unit_elems <= budget_bytes]
    if not fit:
        fit = [divs[-1]]
    t = fit[0]
    if t == axis_len:
        smaller = [d for d in fit if d < axis_len and d >= 8]
        if smaller:
            t = smaller[0]
    return t


@functools.lru_cache(maxsize=None)
def _irnn_v_fn(N, H, Wf, Cf):
    wt = _pick_scan_tile(Wf, H * Cf, sublane_constrained=True)
    unroll = True if H <= 32 else 8
    kernel = functools.partial(_irnn_v_kernel, unroll=unroll)
    grid = (N, Wf // wt)
    f = pl.pallas_call(
        kernel,
        out_shape=(jax.ShapeDtypeStruct((N, H, Wf, Cf), jnp.bfloat16),
                   jax.ShapeDtypeStruct((N, H, Wf, Cf), jnp.bfloat16)),
        grid_spec=pltpu.PrefetchScalarGridSpec(
            num_scalar_prefetch=0,
            grid=grid,
            in_specs=[
                pl.BlockSpec((1, H, wt, Cf), lambda n, w: (n, 0, w, 0)),
                pl.BlockSpec((1, Cf), lambda n, w: (0, 0)),
                pl.BlockSpec((1, Cf), lambda n, w: (0, 0)),
                pl.BlockSpec((1, Cf), lambda n, w: (0, 0)),
                pl.BlockSpec((1, Cf), lambda n, w: (0, 0)),
            ],
            out_specs=(pl.BlockSpec((1, H, wt, Cf), lambda n, w: (n, 0, w, 0)),
                       pl.BlockSpec((1, H, wt, Cf), lambda n, w: (n, 0, w, 0))),
        ),
        compiler_params=pltpu.CompilerParams(
            dimension_semantics=("parallel", "parallel")),
    )
    return jax.jit(f)


@functools.lru_cache(maxsize=None)
def _irnn_h_fn(N, H, W, C):
    ht = _pick_scan_tile(H, W * C, sublane_constrained=False)
    grid = (N, H // ht)
    f = pl.pallas_call(
        _irnn_h_kernel,
        out_shape=(jax.ShapeDtypeStruct((N, H, W, C), jnp.bfloat16),
                   jax.ShapeDtypeStruct((N, H, W, C), jnp.bfloat16)),
        grid_spec=pltpu.PrefetchScalarGridSpec(
            num_scalar_prefetch=0,
            grid=grid,
            in_specs=[
                pl.BlockSpec((1, ht, W, C), lambda n, h: (n, h, 0, 0)),
                pl.BlockSpec((1, C), lambda n, h: (0, 0)),
                pl.BlockSpec((1, C), lambda n, h: (0, 0)),
                pl.BlockSpec((1, C), lambda n, h: (0, 0)),
                pl.BlockSpec((1, C), lambda n, h: (0, 0)),
            ],
            out_specs=(pl.BlockSpec((1, ht, W, C), lambda n, h: (n, h, 0, 0)),
                       pl.BlockSpec((1, ht, W, C), lambda n, h: (n, h, 0, 0))),
        ),
        compiler_params=pltpu.CompilerParams(
            dimension_semantics=("parallel", "parallel")),
    )
    return jax.jit(f)


def spacial_irnn(x, params):
    """Returns (top_up, top_right, top_down, top_left), each (N,H,W,C) bf16."""
    (up_w, right_w, down_w, left_w, up_b, right_b, down_b, left_b) = params
    N, H, W, C = x.shape
    x = x.astype(jnp.bfloat16)

    # vertical scans: fwd = down, bwd = up.  Fold adjacent columns into channels when C<128
    # so the lane dim is 128-dense (free reshape; per-channel recurrence is column-independent).
    fold = 1
    if C < 128 and 128 % C == 0 and W % (128 // C) == 0:
        fold = 128 // C
    Wf, Cf = W // fold, C * fold
    xv = x.reshape(N, H, Wf, Cf)
    tile_p = lambda v: jnp.tile(v.astype(jnp.float32), fold).reshape(1, Cf)
    down, up = _irnn_v_fn(N, H, Wf, Cf)(
        xv, tile_p(down_w), tile_p(down_b), tile_p(up_w), tile_p(up_b))
    down = down.reshape(N, H, W, C)
    up = up.reshape(N, H, W, C)

    # horizontal scans done in-place along axis 2: fwd = right, bwd = left (no transposes).
    r1 = lambda v: v.astype(jnp.float32).reshape(1, C)
    right, left = _irnn_h_fn(N, H, W, C)(
        x, r1(right_w), r1(right_b), r1(left_w), r1(left_b))
    return up, right, down, left


# ----------------------------------------------------------------------------
# Bilinear upsample (align_corners=True) via interpolation-matrix matmuls (bf16)
# ----------------------------------------------------------------------------
def _interp_matrix(out_size, in_size):
    if in_size == 1:
        return jnp.ones((out_size, 1), jnp.float32)
    if out_size == 1:
        return jnp.zeros((1, in_size), jnp.float32).at[0, 0].set(1.0)
    src = jnp.arange(out_size, dtype=jnp.float32) * ((in_size - 1) / (out_size - 1))
    i0 = jnp.clip(jnp.floor(src).astype(jnp.int32), 0, in_size - 2)
    frac = src - i0.astype(jnp.float32)
    rows = jnp.arange(out_size)
    A = jnp.zeros((out_size, in_size), jnp.float32)
    A = A.at[rows, i0].add(1.0 - frac)
    A = A.at[rows, i0 + 1].add(frac)
    return A


def bilinear_upsample(x, Ho, Wo, act="none", out_dtype=jnp.bfloat16):
    # TODO(synk): a single gather+lerp Pallas kernel keeping C lane-dense would also remove
    #             the three layout transposes below; with bf16 operands/outputs the matmul
    #             form is already cheap at these shapes.
    N, Hi, Wi, C = x.shape
    Aw = _interp_matrix(Wo, Wi)          # (Wo, Wi)
    Ah = _interp_matrix(Ho, Hi)          # (Ho, Hi)
    zW = jnp.zeros((Wo,), jnp.float32)
    zH = jnp.zeros((Ho,), jnp.float32)
    t = jnp.transpose(x, (0, 3, 1, 2)).reshape(N * C * Hi, Wi)
    t = matmul_bias_act(t, Aw.T, zW, "none", out_dtype=jnp.bfloat16)
    t = t.reshape(N, C, Hi, Wo).transpose(0, 1, 3, 2).reshape(N * C * Wo, Hi)
    t = matmul_bias_act(t, Ah.T, zH, act, out_dtype=out_dtype)
    return t.reshape(N, C, Wo, Ho).transpose(0, 3, 2, 1)           # (N,Ho,Wo,C)


def maxpool3x3s2(x):
    # Backbone stand-in glue (see TODO above).  Runs in the input dtype (bf16).
    neg_inf = jnp.array(-jnp.inf, dtype=x.dtype)
    return lax.reduce_window(x, neg_inf, lax.max,
                             (1, 3, 3, 1), (1, 2, 2, 1),
                             ((0, 0), (1, 1), (1, 1), (0, 0)))


# ----------------------------------------------------------------------------
# Parameter initialisation (deterministic, synthetic)
# ----------------------------------------------------------------------------
def init_conv(key, kh, kw, cin, cout, bias=True):
    k1, k2 = jax.random.split(key)
    fan_in = kh * kw * cin
    w = jax.random.normal(k1, (kh, kw, cin, cout), jnp.float32) * (1.0 / math.sqrt(fan_in))
    b = (jax.random.normal(k2, (cout,), jnp.float32) * 0.01) if bias else None
    return w, b


def init_dsc_module(key, in_channels, out_channels, alpha=1.0):
    ks = jax.random.split(key, 8)
    oc2 = in_channels // 2
    p = {}
    p["conv_in_w"], _ = init_conv(ks[0], 1, 1, in_channels, in_channels, bias=False)
    p["conv2_w"], _ = init_conv(ks[1], 1, 1, in_channels * 4, in_channels, bias=False)
    p["conv3_w"], _ = init_conv(ks[2], 1, 1, in_channels * 4, in_channels, bias=False)
    p["att_w1"], p["att_b1"] = init_conv(ks[3], 3, 3, in_channels, oc2)
    p["att_w2"], p["att_b2"] = init_conv(ks[4], 3, 3, oc2, oc2)
    p["att_w3"], p["att_b3"] = init_conv(ks[5], 1, 1, oc2, 4)

    def irnn_params(k):
        kk = jax.random.split(k, 4)
        w = jnp.full((out_channels,), alpha, jnp.float32)
        bs = [jax.random.normal(kk[i], (out_channels,), jnp.float32) * 0.01 for i in range(4)]
        # (up_w, right_w, down_w, left_w, up_b, right_b, down_b, left_b)
        return (w, w, w, w, bs[0], bs[1], bs[2], bs[3])

    p["irnn1"] = irnn_params(ks[6])
    p["irnn2"] = irnn_params(ks[7])
    return p


def init_branch(key, cin, mid, k, alpha=1.0):
    ks = jax.random.split(key, 4)
    return {
        "conv1": init_conv(ks[0], k, k, cin, mid),
        "conv2": init_conv(ks[1], k, k, mid, mid),
        "dsc": init_dsc_module(ks[2], mid, mid, alpha),
        "conv3": init_conv(ks[3], 1, 1, mid * 2, 32),
        "pad1": k // 2,
    }


def init_params(key):
    ks = jax.random.split(key, 24)
    P = {
        # stand-in backbone (channel/stride matched to ResNeXt101 stages)
        "bb0": init_conv(ks[0], 7, 7, 3, 64),
        "bb1": init_conv(ks[1], 1, 1, 64, 256),
        "bb2": init_conv(ks[2], 1, 1, 256, 512),
        "bb3": init_conv(ks[3], 1, 1, 512, 1024),
        "bb4": init_conv(ks[4], 1, 1, 1024, 2048),
        "l4": init_branch(ks[5], 2048, 512, 7, 1.0),
        "l3": init_branch(ks[6], 1024, 256, 5, 1.0),
        "l2": init_branch(ks[7], 512, 128, 5, 1.0),
        "l1": init_branch(ks[8], 256, 64, 3, 0.8),
        "l0": init_branch(ks[9], 64, 64, 3, 0.8),
        "global_conv": init_conv(ks[10], 1, 1, 160, 32),
        "l4_predict": init_conv(ks[11], 1, 1, 32, 1),
        "l3_predict_ori": init_conv(ks[12], 1, 1, 32, 1),
        "l3_predict": init_conv(ks[13], 1, 1, 2, 1),
        "l2_predict_ori": init_conv(ks[14], 1, 1, 32, 1),
        "l2_predict": init_conv(ks[15], 1, 1, 3, 1),
        "l1_predict_ori": init_conv(ks[16], 1, 1, 32, 1),
        "l1_predict": init_conv(ks[17], 1, 1, 4, 1),
        "l0_predict_ori": init_conv(ks[18], 1, 1, 32, 1),
        "l0_predict": init_conv(ks[19], 1, 1, 5, 1),
        "global_predict": init_conv(ks[20], 1, 1, 32, 1),
        "fusion_predict": init_conv(ks[21], 1, 1, 6, 1),
    }
    return P


# ----------------------------------------------------------------------------
# Module forward passes
# ----------------------------------------------------------------------------
def dsc_module(x, p, compute_attention=False):
    if compute_attention:
        # The PyTorch reference applies the attention maps with NON-inplace Tensor.mul()
        # and discards the result, so this branch never affects the output.  It is skipped
        # by default (pure dead compute) — enable only for parity experiments.
        a1 = conv2d(x, p["att_w1"], p["att_b1"], 1, 1, "relu")
        a2 = conv2d(a1, p["att_w2"], p["att_b2"], 1, 1, "relu")
        _weight = conv2d(a2, p["att_w3"], p["att_b3"], 1, 0, "sigmoid")
    out = conv2d(x, p["conv_in_w"], None, 1, 0, "none")
    u, r, d, l = spacial_irnn(out, p["irnn1"])
    out = jnp.concatenate([u, r, d, l], axis=-1)
    out = conv2d(out, p["conv2_w"], None, 1, 0, "none")
    u, r, d, l = spacial_irnn(out, p["irnn2"])
    out = jnp.concatenate([u, r, d, l], axis=-1)
    out = conv2d(out, p["conv3_w"], None, 1, 0, "relu")
    return out


def dsc_forward(x, P):
    """x: (N,H,W,3) NHWC float32 -> (N,H,W,1) float32."""
    Ho, Wo = x.shape[1], x.shape[2]

    # --- stand-in backbone (all intermediate activations bf16) ---
    l0 = conv2d(x, *P["bb0"], stride=2, padding=3, act="relu")
    l0 = maxpool3x3s2(l0)                                         # (N, H/4, W/4, 64)
    l1 = conv2d(l0, *P["bb1"], stride=1, padding=0, act="relu")   # 256
    l2 = conv2d(l1, *P["bb2"], stride=2, padding=0, act="relu")   # 512
    l3 = conv2d(l2, *P["bb3"], stride=2, padding=0, act="relu")   # 1024
    l4 = conv2d(l3, *P["bb4"], stride=2, padding=0, act="relu")   # 2048

    def branch(feat, p):
        c1 = conv2d(feat, *p["conv1"], stride=1, padding=p["pad1"], act="relu")
        c2 = conv2d(c1, *p["conv2"], stride=1, padding=p["pad1"], act="relu")
        dsc = dsc_module(c2, p["dsc"])
        ctx = jnp.concatenate([c2, dsc], axis=-1)
        c3 = conv2d(ctx, *p["conv3"], stride=1, padding=0, act="none")
        return bilinear_upsample(c3, Ho, Wo, act="relu")          # upsample + relu fused

    l4_up = branch(l4, P["l4"])
    l3_up = branch(l3, P["l3"])
    l2_up = branch(l2, P["l2"])
    l1_up = branch(l1, P["l1"])
    l0_up = branch(l0, P["l0"])

    global_concat = jnp.concatenate([l0_up, l1_up, l2_up, l3_up, l4_up], axis=-1)
    global_conv = conv2d(global_concat, *P["global_conv"], 1, 0, "relu")

    # --- all six 32->1 heads fused into one block-diagonal 192->6 Pallas matmul (f32 out) ---
    heads = [("l4_predict", l4_up), ("l3_predict_ori", l3_up), ("l2_predict_ori", l2_up),
             ("l1_predict_ori", l1_up), ("l0_predict_ori", l0_up), ("global_predict", global_conv)]
    Nn, Hh, Ww, _ = l4_up.shape
    M = Nn * Hh * Ww
    nh = len(heads)
    cat = jnp.concatenate([h[1] for h in heads], axis=-1).reshape(M, 32 * nh)
    cols, bvals = [], []
    for i, (name, _) in enumerate(heads):
        w, bb = P[name]
        col = jnp.zeros((32 * nh, 1), jnp.float32)
        col = col.at[32 * i:32 * (i + 1), 0].set(w.reshape(32))
        cols.append(col)
        bvals.append(bb.reshape(1))
    Wfull = jnp.concatenate(cols, axis=1)                 # (192, 6) block-diagonal
    bfull = jnp.concatenate(bvals)                        # (6,)
    ori = matmul_bias_act(cat, Wfull, bfull, "none",
                          out_dtype=jnp.float32).reshape(Nn, Hh, Ww, nh)
    l4_pred = ori[..., 0:1]
    l3_pred_ori = ori[..., 1:2]
    l2_pred_ori = ori[..., 2:3]
    l1_pred_ori = ori[..., 3:4]
    l0_pred_ori = ori[..., 4:5]
    g_pred = ori[..., 5:6]

    # Tiny chained predicts (2..6 input channels, 1 output): >95% of a Pallas matmul would
    # be padding, so they run as plain XLA weighted sums on the VPU (f32).
    def chain(pred_name, feats):
        w, bias = P[pred_name]
        wv = w.reshape(-1)
        out = bias[0]
        for i, f in enumerate(feats):
            out = out + wv[i] * f
        return out

    l3_pred = chain("l3_predict", [l3_pred_ori, l4_pred])
    l2_pred = chain("l2_predict", [l2_pred_ori, l3_pred_ori, l4_pred])
    l1_pred = chain("l1_predict", [l1_pred_ori, l2_pred_ori, l3_pred_ori, l4_pred])
    l0_pred = chain("l0_predict", [l0_pred_ori, l1_pred_ori, l2_pred_ori,
                                   l3_pred_ori, l4_pred])
    fusion_predict = chain("fusion_predict", [l0_pred, l1_pred, l2_pred,
                                              l3_pred, l4_pred, g_pred])
    return fusion_predict


# ----------------------------------------------------------------------------
if __name__ == "__main__":
    key = jax.random.PRNGKey(0)
    pkey, xkey = jax.random.split(key)
    P = init_params(pkey)

    # Input in PyTorch NCHW convention, then converted to the kernel's NHWC layout.
    # 64x64 is the smallest spatial size that keeps the /32 backbone stages non-degenerate.
    x_nchw = jax.random.normal(xkey, (1, 3, 64, 64), jnp.float32)
    x = jnp.transpose(x_nchw, (0, 2, 3, 1))                 # NHWC

    out_nhwc = dsc_forward(x, P)                            # (1, 64, 64, 1)
    out = jnp.transpose(out_nhwc, (0, 3, 1, 2))             # back to NCHW (1, 1, 64, 64)
    out = jax.block_until_ready(out)

    assert out.shape == (1, 1, 64, 64)
    assert bool(jnp.all(jnp.isfinite(out)))
    print("KERNEL_OK")
</pallas_src>

<mosaic_0001>
module attributes {stable_mosaic.version = 11 : i64} {
  func.func @kernel(%arg0: i32, %arg1: i32, %arg2: i32, %arg3: memref<512x160xbf16, #tpu.memory_space<vmem>>, %arg4: memref<160x64xbf16, #tpu.memory_space<vmem>>, %arg5: memref<1x64xf32, #tpu.memory_space<vmem>>, %arg6: memref<512x64xbf16, #tpu.memory_space<vmem>>, %arg7: memref<512x64xf32, #tpu.memory_space<vmem>>) attributes {dimension_semantics = [#tpu.dimension_semantics<parallel>, #tpu.dimension_semantics<parallel>, #tpu.dimension_semantics<arbitrary>], iteration_bounds = array<i64: 2, 1, 1>, scalar_prefetch = 0 : i64, scratch_operands = 1 : i64, tpu.core_type = #tpu.core_type<tc>, window_params = [{transform_indices = @transform_0, window_bounds = array<i64: 512, 160>}, {transform_indices = @transform_1, window_bounds = array<i64: 160, 64>}, {transform_indices = @transform_2, window_bounds = array<i64: 1, 64>}, {transform_indices = @transform_3, window_bounds = array<i64: 512, 64>}]} {
    %c0_i32 = arith.constant 0 : i32
    %0 = arith.cmpi eq, %arg2, %c0_i32 : i32
    %1 = arith.extui %0 : i1 to i32
    %c0_i32_0 = arith.constant 0 : i32
    %2 = arith.cmpi ne, %1, %c0_i32_0 : i32
    scf.if %2 {
      %cst_10 = arith.constant 0.000000e+00 : f32
      %12 = vector.broadcast %cst_10 : f32 to vector<512x64xf32>
      %c0_11 = arith.constant 0 : index
      %c0_12 = arith.constant 0 : index
      %13 = vector.load %arg7[%c0_11, %c0_12] : memref<512x64xf32, #tpu.memory_space<vmem>>, vector<512x64xf32>
      tpu.vector_store %arg7[%c0_11, %c0_12], %12 {strides = array<i32>} : memref<512x64xf32, #tpu.memory_space<vmem>>, vector<512x64xf32>,
    } else {
    }
    %c0 = arith.constant 0 : index
    %c0_1 = arith.constant 0 : index
    %3 = vector.load %arg7[%c0, %c0_1] : memref<512x64xf32, #tpu.memory_space<vmem>>, vector<512x64xf32>
    %c0_2 = arith.constant 0 : index
    %c0_3 = arith.constant 0 : index
    %4 = vector.load %arg3[%c0_2, %c0_3] : memref<512x160xbf16, #tpu.memory_space<vmem>>, vector<512x160xbf16>
    %c0_4 = arith.constant 0 : index
    %c0_5 = arith.constant 0 : index
    %5 = vector.load %arg4[%c0_4, %c0_5] : memref<160x64xbf16, #tpu.memory_space<vmem>>, vector<160x64xbf16>
    %cst = arith.constant dense<0.000000e+00> : vector<512x64xf32>
    %6 = tpu.matmul %4, %5, %cst {dimension_numbers = #tpu.dot_dimension_numbers<[1], [0], [0], [1], [0, 0, 1, 1], [], []>} : vector<512x160xbf16>, vector<160x64xbf16>, vector<512x64xf32> -> vector<512x64xf32>
    %7 = arith.addf %3, %6 : vector<512x64xf32>
    %c0_6 = arith.constant 0 : index
    %c0_7 = arith.constant 0 : index
    %8 = vector.load %arg7[%c0_6, %c0_7] : memref<512x64xf32, #tpu.memory_space<vmem>>, vector<512x64xf32>
    tpu.vector_store %arg7[%c0_6, %c0_7], %7 {strides = array<i32>} : memref<512x64xf32, #tpu.memory_space<vmem>>, vector<512x64xf32>,
    %c0_i32_8 = arith.constant 0 : i32
    %9 = arith.cmpi eq, %arg2, %c0_i32_8 : i32
    %10 = arith.extui %9 : i1 to i32
    %c0_i32_9 = arith.constant 0 : i32
    %11 = arith.cmpi ne, %10, %c0_i32_9 : i32
    scf.if %11 {
      %c0_10 = arith.constant 0 : index
      %c0_11 = arith.constant 0 : index
      %12 = vector.load %arg7[%c0_10, %c0_11] : memref<512x64xf32, #tpu.memory_space<vmem>>, vector<512x64xf32>
      %c0_12 = arith.constant 0 : index
      %c0_13 = arith.constant 0 : index
      %13 = vector.load %arg5[%c0_12, %c0_13] : memref<1x64xf32, #tpu.memory_space<vmem>>, vector<1x64xf32>
      %14 = vector.broadcast %13 : vector<1x64xf32> to vector<512x64xf32>
      %15 = arith.addf %12, %14 : vector<512x64xf32>
      %cst_14 = arith.constant 0.000000e+00 : f32
      %16 = vector.broadcast %cst_14 : f32 to vector<512x64xf32>
      %17 = arith.maximumf %15, %16 : vector<512x64xf32>
      %18 = arith.truncf %17 : vector<512x64xf32> to vector<512x64xbf16>
      %c0_15 = arith.constant 0 : index
      %c0_16 = arith.constant 0 : index
      %19 = vector.load %arg6[%c0_15, %c0_16] : memref<512x64xbf16, #tpu.memory_space<vmem>>, vector<512x64xbf16>
      tpu.vector_store %arg6[%c0_15, %c0_16], %18 {strides = array<i32>} : memref<512x64xbf16, #tpu.memory_space<vmem>>, vector<512x64xbf16>,
    } else {
    }
    return
  }
  func.func @transform_0(%arg0: i32, %arg1: i32, %arg2: i32) -> (i32, i32) {
    %c0_i32 = arith.constant 0 : i32
    return %arg0, %arg2 : i32, i32
  }
  func.func @transform_1(%arg0: i32, %arg1: i32, %arg2: i32) -> (i32, i32) {
    %c0_i32 = arith.constant 0 : i32
    return %arg2, %arg1 : i32, i32
  }
  func.func @transform_2(%arg0: i32, %arg1: i32, %arg2: i32) -> (i32, i32) {
    %c0_i32 = arith.constant 0 : i32
    %c0_i32_0 = arith.constant 0 : i32
    return %c0_i32, %arg1 : i32, i32
  }
  func.func @transform_3(%arg0: i32, %arg1: i32, %arg2: i32) -> (i32, i32) {
    %c0_i32 = arith.constant 0 : i32
    return %arg0, %arg1 : i32, i32
  }
}

</mosaic_0001>

<llo_original>
// kernel: tpu_custom_call.1
$region0: #{tpu_custom_call.1}
  #allocation0 [shape = 'u32[]', space=smem, size = 0x4, offset = 0x4, fixed_abs, tag = 'smem constant byte address 0x4 - core index']
  #allocation1 [shape = 'u32[144,128]{1,0:T(1,128)}', space=vmem, size = 0x12000, scoped, tag = 'internal scratch']
  #allocation2 [shape = 'f32[512,64]{1,0:T(8,128)}', space=vmem, size = 0x40000, scoped, tag = 'scratch operand']
  %s0 = inlined_call_operand.vmem [shape: bf16[1024,160], index: 0, kind: input, shape index: {}]
  %s1 = inlined_call_operand.vmem [shape: bf16[160,64], index: 1, kind: input, shape index: {}]
  %s2 = inlined_call_operand.vmem [shape: f32[1,64], index: 2, kind: input, shape index: {}]
  %s3 = inlined_call_operand.vmem [shape: bf16[1024,64], index: 3, kind: output, shape index: {}]
  %s4 = sld [smem:[#allocation0]]
  $region53: #{tpu_custom_call.1} parent=0
    _
  %s6 = ssub.s32 1, %s4
  %s7 = scalar_select 0, %s6, %s4
  loop: start=0, step=1, limit=4
  $region2: #{tpu_custom_call.1} parent=0 // loop_pre_header
    _
  $region3: #{tpu_custom_call.1} parent=0 // loop_header
    %s9 = sphi 0, %s13
    %p10 = scmp.ge.s32.totalorder %s9, 4
    %s16 = sphi 0, %s35
    %s17 = sphi 0, %s31
    %s18 = sphi 0, %s27
    %s19 = sphi 0, %s16
    %s20 = sphi 0, %s17
    %s21 = sphi 0, %s18
    %s22 = sphi 0, %s19
    %s23 = sphi 0, %s20
    %s24 = sphi 0, %s21
    %s40 = sphi 0, %s42
    %s43 = sphi 0, %s40
    %s44 = sphi 0, %s43
    %s60 = sphi 0, %s44
    %s68 = sphi 0, %s70
    %s71 = sphi 0, %s68
    %s72 = sphi 0, %s71
    %s88 = sphi 0, %s72
    %s94 = sphi 0, %s96
    %s97 = sphi 0, %s94
    %s98 = sphi 0, %s97
    %s114 = sphi 0, %s98
    %s122 = sphi 0, %s124
    %s125 = sphi 0, %s122
    %s126 = sphi 0, %s125
    %s142 = sphi 0, %s126
  $region4: #{tpu_custom_call.1} parent=0 // loop_header_branch
    %12 = sbr.rel (%p10) target = $region8
  $region5: #{tpu_custom_call.1} parent=0 // loop_body
    %s14 = ssub.s32 %s9, 1
    %s15 = ssub.s32 %s9, 2
    %s25 = sadd.s32 1, %s18
    %p26 = scmp.ge.s32.totalorder %s25, 1
    %s27 = scalar_select %p26, 0, %s25
    %s28 = sadd.s32 1, %s17
    %s29 = scalar_select %p26, %s28, %s17
    %p30 = scmp.ge.s32.totalorder %s29, 1
    %s31 = scalar_select %p30, 0, %s29
    %s32 = sadd.s32 1, %s16
    %s33 = scalar_select %p30, %s32, %s16
    %p34 = scmp.ge.s32.totalorder %s33, 2
    %s35 = scalar_select %p34, 0, %s33
    %s36 = ssub.s32 %s16, %s35
    %s37 = ssub.s32 %s18, %s27
    %s38 = sor.u32 %s36, %s37
    %p39 = scmp.eq.s32.totalorder %s38, 0
    %s41 = sadd.s32 %s40, 1
    %s42 = scalar_select %p39, %s40, %s41
    %p45 = pneg %p39
    %p46 = scmp.eq.s32.totalorder %s9, 1
    %p47 = por %p45, %p46
    %p48 = scmp.ne.s32.totalorder %s40, %s43
    %p49 = scmp.eq.s32.totalorder %s9, 0
    %p50 = por %p48, %p49
    %p51 = scmp.ne.s32.totalorder %s40, %s43
    %p52 = scmp.eq.s32.totalorder %s14, 1
    %p53 = por %p51, %p52
    %p54 = scmp.ne.s32.totalorder %s43, %s44
    %p55 = scmp.eq.s32.totalorder %s14, 0
    %p56 = por %p54, %p55
    %p57 = scmp.ne.s32.totalorder %s43, %s44
    %p58 = scmp.eq.s32.totalorder %s15, 1
    %p59 = por %p57, %p58
    %p61 = scmp.ne.s32.totalorder %s44, %s60
    %p62 = scmp.eq.s32.totalorder %s15, 0
    %p63 = por %p61, %p62
    %s64 = ssub.s32 %s18, %s27
    %s65 = ssub.s32 %s17, %s31
    %s66 = sor.u32 %s64, %s65
    %p67 = scmp.eq.s32.totalorder %s66, 0
    %s69 = sadd.s32 %s68, 1
    %s70 = scalar_select %p67, %s68, %s69
    %p73 = pneg %p67
    %p74 = scmp.eq.s32.totalorder %s9, 1
    %p75 = por %p73, %p74
    %p76 = scmp.ne.s32.totalorder %s68, %s71
    %p77 = scmp.eq.s32.totalorder %s9, 0
    %p78 = por %p76, %p77
    %p79 = scmp.ne.s32.totalorder %s68, %s71
    %p80 = scmp.eq.s32.totalorder %s14, 1
    %p81 = por %p79, %p80
    %p82 = scmp.ne.s32.totalorder %s71, %s72
    %p83 = scmp.eq.s32.totalorder %s14, 0
    %p84 = por %p82, %p83
    %p85 = scmp.ne.s32.totalorder %s71, %s72
    %p86 = scmp.eq.s32.totalorder %s15, 1
    %p87 = por %p85, %p86
    %p89 = scmp.ne.s32.totalorder %s72, %s88
    %p90 = scmp.eq.s32.totalorder %s15, 0
    %p91 = por %p89, %p90
    %s92 = ssub.s32 %s17, %s31
    %p93 = scmp.eq.s32.totalorder %s92, 0
    %s95 = sadd.s32 %s94, 1
    %s96 = scalar_select %p93, %s94, %s95
    %p99 = pneg %p93
    %p100 = scmp.eq.s32.totalorder %s9, 1
    %p101 = por %p99, %p100
    %p102 = scmp.ne.s32.totalorder %s94, %s97
    %p103 = scmp.eq.s32.totalorder %s9, 0
    %p104 = por %p102, %p103
    %p105 = scmp.ne.s32.totalorder %s94, %s97
    %p106 = scmp.eq.s32.totalorder %s14, 1
    %p107 = por %p105, %p106
    %p108 = scmp.ne.s32.totalorder %s97, %s98
    %p109 = scmp.eq.s32.totalorder %s14, 0
    %p110 = por %p108, %p109
    %p111 = scmp.ne.s32.totalorder %s97, %s98
    %p112 = scmp.eq.s32.totalorder %s15, 1
    %p113 = por %p111, %p112
    %p115 = scmp.ne.s32.totalorder %s98, %s114
    %p116 = scmp.eq.s32.totalorder %s15, 0
    %p117 = por %p115, %p116
    %s118 = ssub.s32 %s16, %s35
    %s119 = ssub.s32 %s17, %s31
    %s120 = sor.u32 %s118, %s119
    %p121 = scmp.eq.s32.totalorder %s120, 0
    %s123 = sadd.s32 %s122, 1
    %s124 = scalar_select %p121, %s122, %s123
    %p127 = pneg %p121
    %p128 = scmp.eq.s32.totalorder %s9, 1
    %p129 = por %p127, %p128
    %p130 = scmp.ne.s32.totalorder %s122, %s125
    %p131 = scmp.eq.s32.totalorder %s9, 0
    %p132 = por %p130, %p131
    %p133 = scmp.ne.s32.totalorder %s122, %s125
    %p134 = scmp.eq.s32.totalorder %s14, 1
    %p135 = por %p133, %p134
    %p136 = scmp.ne.s32.totalorder %s125, %s126
    %p137 = scmp.eq.s32.totalorder %s14, 0
    %p138 = por %p136, %p137
    %p139 = scmp.ne.s32.totalorder %s125, %s126
    %p140 = scmp.eq.s32.totalorder %s15, 1
    %p141 = por %p139, %p140
    %p143 = scmp.ne.s32.totalorder %s126, %s142
    %p144 = scmp.eq.s32.totalorder %s15, 0
    %p145 = por %p143, %p144
    %p146 = scmp.le.s32.totalorder 1, %s9
    %p147 = scmp.lt.s32.totalorder %s9, 3
    %p148 = pnand %p146, %p147
    %p149 = pneg %p148
    // Predicated region
    $region9: #{tpu_custom_call.1} parent=5 // pred_check
      _
    $region10: #{tpu_custom_call.1} parent=5 // pred_check_branch
      %151 = sbr.rel (%p148) target = $region12
    $region11: #{tpu_custom_call.1} parent=5 // pred_region
      %s152 = ssub.s32 %s9, 1
      // Predicated region
      $region13: #{tpu_custom_call.1} parent=11 // pred_check
        %p153 = pneg %p84
      $region14: #{tpu_custom_call.1} parent=11 // pred_check_branch
        %155 = sbr.rel (%p153) target = $region16
      $region15: #{tpu_custom_call.1} parent=11 // pred_region
        %s156 = smul.u32 20, %s21
        %p157 = scmp.lt.s32.totalorder %s156, 19
        %s158 = scalar_select %p157, %s156, 19
        %p159 = scmp.lt.s32.totalorder %s20, 0
        %s160 = scalar_select %p159, %s20, 0
        %s161 = sadd.s32 %s160, %s158
        %s162 = smul.addr %s161, 4
        %s163 = scalar_lea.vmem %s1, %s162
        %s164 = smul.u32 20, %s21
      $region16: #{tpu_custom_call.1} parent=11 // pred_fallthru
        _
      // Predicated region
      $region17: #{tpu_custom_call.1} parent=11 // pred_check
        %p165 = pneg %p110
      $region18: #{tpu_custom_call.1} parent=11 // pred_check_branch
        %167 = sbr.rel (%p165) target = $region20
      $region19: #{tpu_custom_call.1} parent=11 // pred_region
        %p168 = scmp.lt.s32.totalorder %s20, 0
        %s169 = scalar_select %p168, %s20, 0
        %s170 = scalar_lea.vmem %s2, %s169
      $region20: #{tpu_custom_call.1} parent=11 // pred_fallthru
        _
    $region12: #{tpu_custom_call.1} parent=5 // pred_fallthru
      _
    %p171 = scmp.lt.s32.totalorder %s9, 2
    // Predicated region
    $region21: #{tpu_custom_call.1} parent=5 // pred_check
      %p172 = pneg %p171
    $region22: #{tpu_custom_call.1} parent=5 // pred_check_branch
      %174 = sbr.rel (%p172) target = $region24
    $region23: #{tpu_custom_call.1} parent=5 // pred_region
      // Predicated region
      $region25: #{tpu_custom_call.1} parent=23 // pred_check
        %p175 = pneg %p50
      $region26: #{tpu_custom_call.1} parent=23 // pred_check_branch
        %177 = sbr.rel (%p175) target = $region28
      $region27: #{tpu_custom_call.1} parent=23 // pred_region
        %s178 = smul.u32 64, %s16
        %s179 = smul.u32 2, %s18
        %p180 = scmp.lt.s32.totalorder %s178, 127
        %s181 = scalar_select %p180, %s178, 127
        %p182 = scmp.lt.s32.totalorder %s179, 1
        %s183 = scalar_select %p182, %s179, 1
        %s184 = smul.addr %s181, 2
        %s185 = sadd.s32 %s183, %s184
        %s186 = smul.addr %s185, 4
        %s187 = scalar_lea.vmem %s0, %s186
        %s188 = smul.u32 64, %s16
        %s189 = smul.u32 2, %s18
      $region28: #{tpu_custom_call.1} parent=23 // pred_fallthru
        _
    $region24: #{tpu_custom_call.1} parent=5 // pred_fallthru
      _
    %p190 = scmp.le.s32.totalorder 1, %s9
    %p191 = scmp.lt.s32.totalorder %s9, 3
    %p192 = pnand %p190, %p191
    %p193 = pneg %p192
    // Predicated region
    $region29: #{tpu_custom_call.1} parent=5 // pred_check
      _
    $region30: #{tpu_custom_call.1} parent=5 // pred_check_branch
      %195 = sbr.rel (%p192) target = $region32
    $region31: #{tpu_custom_call.1} parent=5 // pred_region
      %s196 = ssub.s32 %s9, 1
      %s197 = smul.u32 64, %s19
      %s198 = smul.u32 2, %s21
      %p199 = scmp.lt.s32.totalorder %s197, 127
      %s200 = scalar_select %p199, %s197, 127
      %p201 = scmp.lt.s32.totalorder %s198, 1
      %s202 = scalar_select %p201, %s198, 1
      %s203 = smul.addr %s200, 2
      %s204 = sadd.s32 %s202, %s203
      %s205 = smul.addr %s204, 4
      %s206 = scalar_lea.vmem %s0, %s205
      %p207 = pneg %p56
      %p208 = pneg %p53
      %s209 = smul.u32 20, %s21
      %p210 = scmp.lt.s32.totalorder %s209, 19
      %s211 = scalar_select %p210, %s209, 19
      %p212 = scmp.lt.s32.totalorder %s20, 0
      %s213 = scalar_select %p212, %s20, 0
      %s214 = sadd.s32 %s213, %s211
      %s215 = smul.addr %s214, 4
      %s216 = scalar_lea.vmem %s1, %s215
      %p217 = pneg %p84
      %p218 = pneg %p81
      %p219 = scmp.lt.s32.totalorder %s20, 0
      %s220 = scalar_select %p219, %s20, 0
      %s221 = scalar_lea.vmem %s2, %s220
      %p222 = pneg %p110
      %p223 = pneg %p107
      %p224 = pneg %p138
      %p225 = pneg %p135
      %s226 = smul.u32 64, %s19
      %p227 = scmp.lt.s32.totalorder %s226, 127
      %s228 = scalar_select %p227, %s226, 127
      %p229 = scmp.lt.s32.totalorder %s20, 0
      %s230 = scalar_select %p229, %s20, 0
      %s231 = sadd.s32 %s230, %s228
      %s232 = smul.addr %s231, 4
      %s233 = scalar_lea.vmem %s3, %s232
      %s234 = smul.u32 64, %s19
      %s235 = smul.u32 2, %s21
      %p236 = scmp.lt.s32.totalorder %s234, 127
      %s237 = scalar_select %p236, %s234, 127
      %p238 = scmp.lt.s32.totalorder %s235, 1
      %s239 = scalar_select %p238, %s235, 1
      %s240 = smul.addr %s237, 2
      %s241 = sadd.s32 %s239, %s240
      %s242 = smul.addr %s241, 4
      %s243 = scalar_lea.vmem %s0, %s242
      %s244 = smul.u32 64, %s19
      %s245 = smul.u32 2, %s21
      %s246 = smul.u32 20, %s21
      %p247 = scmp.lt.s32.totalorder %s246, 19
      %s248 = scalar_select %p247, %s246, 19
      %p249 = scmp.lt.s32.totalorder %s20, 0
      %s250 = scalar_select %p249, %s20, 0
      %s251 = sadd.s32 %s250, %s248
      %s252 = smul.addr %s251, 4
      %s253 = scalar_lea.vmem %s1, %s252
      %s254 = smul.u32 20, %s21
      %p255 = scmp.lt.s32.totalorder %s20, 0
      %s256 = scalar_select %p255, %s20, 0
      %s257 = scalar_lea.vmem %s2, %s256
      %s258 = smul.u32 64, %s19
      %p259 = scmp.lt.s32.totalorder %s258, 127
      %s260 = scalar_select %p259, %s258, 127
      %p261 = scmp.lt.s32.totalorder %s20, 0
      %s262 = scalar_select %p261, %s20, 0
      %s263 = sadd.s32 %s262, %s260
      %s264 = smul.addr %s263, 4
      %s265 = scalar_lea.vmem %s3, %s264
      %s266 = smul.u32 64, %s19
      %p268 = scmp.eq.s32.totalorder %s21, 0
      // Predicated region
      $region33: #{tpu_custom_call.1} parent=31 // pred_check
        %p269 = pneg %p268
      $region34: #{tpu_custom_call.1} parent=31 // pred_check_branch
        %271 = sbr.rel (%p269) target = $region36
      $region35: #{tpu_custom_call.1} parent=31 // pred_region
        %vm272 = vcmask 523264
        %273 = vst.msk [vmem:[#allocation2] sm:$0xff] %vm272, 0.0
        %274 = vst.msk [vmem:[#allocation2 + $0x8] sm:$0xff] %vm272, 0.0
        %275 = vst.msk [vmem:[#allocation2 + $0x10] sm:$0xff] %vm272, 0.0
        %276 = vst.msk [vmem:[#allocation2 + $0x18] sm:$0xff] %vm272, 0.0
        %277 = vst.msk [vmem:[#allocation2 + $0x20] sm:$0xff] %vm272, 0.0
        %278 = vst.msk [vmem:[#allocation2 + $0x28] sm:$0xff] %vm272, 0.0
        %279 = vst.msk [vmem:[#allocation2 + $0x30] sm:$0xff] %vm272, 0.0
        %280 = vst.msk [vmem:[#allocation2 + $0x38] sm:$0xff] %vm272, 0.0
        %281 = vst.msk [vmem:[#allocation2 + $0x40] sm:$0xff] %vm272, 0.0
        %282 = vst.msk [vmem:[#allocation2 + $0x48] sm:$0xff] %vm272, 0.0
        %283 = vst.msk [vmem:[#allocation2 + $0x50] sm:$0xff] %vm272, 0.0
        %284 = vst.msk [vmem:[#allocation2 + $0x58] sm:$0xff] %vm272, 0.0
        %285 = vst.msk [vmem:[#allocation2 + $0x60] sm:$0xff] %vm272, 0.0
        %286 = vst.msk [vmem:[#allocation2 + $0x68] sm:$0xff] %vm272, 0.0
        %287 = vst.msk [vmem:[#allocation2 + $0x70] sm:$0xff] %vm272, 0.0
        %288 = vst.msk [vmem:[#allocation2 + $0x78] sm:$0xff] %vm272, 0.0
        %289 = vst.msk [vmem:[#allocation2 + $0x80] sm:$0xff] %vm272, 0.0
        %290 = vst.msk [vmem:[#allocation2 + $0x88] sm:$0xff] %vm272, 0.0
        %291 = vst.msk [vmem:[#allocation2 + $0x90] sm:$0xff] %vm272, 0.0
        %292 = vst.msk [vmem:[#allocation2 + $0x98] sm:$0xff] %vm272, 0.0
        %293 = vst.msk [vmem:[#allocation2 + $0xa0] sm:$0xff] %vm272, 0.0
        %294 = vst.msk [vmem:[#allocation2 + $0xa8] sm:$0xff] %vm272, 0.0
        %295 = vst.msk [vmem:[#allocation2 + $0xb0] sm:$0xff] %vm272, 0.0
        %296 = vst.msk [vmem:[#allocation2 + $0xb8] sm:$0xff] %vm272, 0.0
        %297 = vst.msk [vmem:[#allocation2 + $0xc0] sm:$0xff] %vm272, 0.0
        %298 = vst.msk [vmem:[#allocation2 + $0xc8] sm:$0xff] %vm272, 0.0
        %299 = vst.msk [vmem:[#allocation2 + $0xd0] sm:$0xff] %vm272, 0.0
        %300 = vst.msk [vmem:[#allocation2 + $0xd8] sm:$0xff] %vm272, 0.0
        %301 = vst.msk [vmem:[#allocation2 + $0xe0] sm:$0xff] %vm272, 0.0
        %302 = vst.msk [vmem:[#allocation2 + $0xe8] sm:$0xff] %vm272, 0.0
        %303 = vst.msk [vmem:[#allocation2 + $0xf0] sm:$0xff] %vm272, 0.0
        %304 = vst.msk [vmem:[#allocation2 + $0xf8] sm:$0xff] %vm272, 0.0
        %305 = vst.msk [vmem:[#allocation2 + $0x100] sm:$0xff] %vm272, 0.0
        %306 = vst.msk [vmem:[#allocation2 + $0x108] sm:$0xff] %vm272, 0.0
        %307 = vst.msk [vmem:[#allocation2 + $0x110] sm:$0xff] %vm272, 0.0
        %308 = vst.msk [vmem:[#allocation2 + $0x118] sm:$0xff] %vm272, 0.0
        %309 = vst.msk [vmem:[#allocation2 + $0x120] sm:$0xff] %vm272, 0.0
        %310 = vst.msk [vmem:[#allocation2 + $0x128] sm:$0xff] %vm272, 0.0
        %311 = vst.msk [vmem:[#allocation2 + $0x130] sm:$0xff] %vm272, 0.0
        %312 = vst.msk [vmem:[#allocation2 + $0x138] sm:$0xff] %vm272, 0.0
        %313 = vst.msk [vmem:[#allocation2 + $0x140] sm:$0xff] %vm272, 0.0
        %314 = vst.msk [vmem:[#allocation2 + $0x148] sm:$0xff] %vm272, 0.0
        %315 = vst.msk [vmem:[#allocation2 + $0x150] sm:$0xff] %vm272, 0.0
        %316 = vst.msk [vmem:[#allocation2 + $0x158] sm:$0xff] %vm272, 0.0
        %317 = vst.msk [vmem:[#allocation2 + $0x160] sm:$0xff] %vm272, 0.0
        %318 = vst.msk [vmem:[#allocation2 + $0x168] sm:$0xff] %vm272, 0.0
        %319 = vst.msk [vmem:[#allocation2 + $0x170] sm:$0xff] %vm272, 0.0
        %320 = vst.msk [vmem:[#allocation2 + $0x178] sm:$0xff] %vm272, 0.0
        %321 = vst.msk [vmem:[#allocation2 + $0x180] sm:$0xff] %vm272, 0.0
        %322 = vst.msk [vmem:[#allocation2 + $0x188] sm:$0xff] %vm272, 0.0
        %323 = vst.msk [vmem:[#allocation2 + $0x190] sm:$0xff] %vm272, 0.0
        %324 = vst.msk [vmem:[#allocation2 + $0x198] sm:$0xff] %vm272, 0.0
        %325 = vst.msk [vmem:[#allocation2 + $0x1a0] sm:$0xff] %vm272, 0.0
        %326 = vst.msk [vmem:[#allocation2 + $0x1a8] sm:$0xff] %vm272, 0.0
        %327 = vst.msk [vmem:[#allocation2 + $0x1b0] sm:$0xff] %vm272, 0.0
        %328 = vst.msk [vmem:[#allocation2 + $0x1b8] sm:$0xff] %vm272, 0.0
        %329 = vst.msk [vmem:[#allocation2 + $0x1c0] sm:$0xff] %vm272, 0.0
        %330 = vst.msk [vmem:[#allocation2 + $0x1c8] sm:$0xff] %vm272, 0.0
        %331 = vst.msk [vmem:[#allocation2 + $0x1d0] sm:$0xff] %vm272, 0.0
        %332 = vst.msk [vmem:[#allocation2 + $0x1d8] sm:$0xff] %vm272, 0.0
        %333 = vst.msk [vmem:[#allocation2 + $0x1e0] sm:$0xff] %vm272, 0.0
        %334 = vst.msk [vmem:[#allocation2 + $0x1e8] sm:$0xff] %vm272, 0.0
        %335 = vst.msk [vmem:[#allocation2 + $0x1f0] sm:$0xff] %vm272, 0.0
        %336 = vst.msk [vmem:[#allocation2 + $0x1f8] sm:$0xff] %vm272, 0.0
      $region36: #{tpu_custom_call.1} parent=31 // pred_fallthru
        _
      %v337 = vld [vmem:[#allocation2] sm:$0xff]
      %v338 = vld [vmem:[#allocation2 + $0x8] sm:$0xff]
      %v339 = vld [vmem:[#allocation2 + $0x10] sm:$0xff]
      %v340 = vld [vmem:[#allocation2 + $0x18] sm:$0xff]
      %v341 = vld [vmem:[#allocation2 + $0x20] sm:$0xff]
      %v342 = vld [vmem:[#allocation2 + $0x28] sm:$0xff]
      %v343 = vld [vmem:[#allocation2 + $0x30] sm:$0xff]
      %v344 = vld [vmem:[#allocation2 + $0x38] sm:$0xff]
      %v345 = vld [vmem:[#allocation2 + $0x40] sm:$0xff]
      %v346 = vld [vmem:[#allocation2 + $0x48] sm:$0xff]
      %v347 = vld [vmem:[#allocation2 + $0x50] sm:$0xff]
      %v348 = vld [vmem:[#allocation2 + $0x58] sm:$0xff]
      %v349 = vld [vmem:[#allocation2 + $0x60] sm:$0xff]
      %v350 = vld [vmem:[#allocation2 + $0x68] sm:$0xff]
      %v351 = vld [vmem:[#allocation2 + $0x70] sm:$0xff]
      %v352 = vld [vmem:[#allocation2 + $0x78] sm:$0xff]
      %v353 = vld [vmem:[#allocation2 + $0x80] sm:$0xff]
      %v354 = vld [vmem:[#allocation2 + $0x88] sm:$0xff]
      %v355 = vld [vmem:[#allocation2 + $0x90] sm:$0xff]
      %v356 = vld [vmem:[#allocation2 + $0x98] sm:$0xff]
      %v357 = vld [vmem:[#allocation2 + $0xa0] sm:$0xff]
      %v358 = vld [vmem:[#allocation2 + $0xa8] sm:$0xff]
      %v359 = vld [vmem:[#allocation2 + $0xb0] sm:$0xff]
      %v360 = vld [vmem:[#allocation2 + $0xb8] sm:$0xff]
      %v361 = vld [vmem:[#allocation2 + $0xc0] sm:$0xff]
      %v362 = vld [vmem:[#allocation2 + $0xc8] sm:$0xff]
      %v363 = vld [vmem:[#allocation2 + $0xd0] sm:$0xff]
      %v364 = vld [vmem:[#allocation2 + $0xd8] sm:$0xff]
      %v365 = vld [vmem:[#allocation2 + $0xe0] sm:$0xff]
      %v366 = vld [vmem:[#allocation2 + $0xe8] sm:$0xff]
      %v367 = vld [vmem:[#allocation2 + $0xf0] sm:$0xff]
      %v368 = vld [vmem:[#allocation2 + $0xf8] sm:$0xff]
      %v369 = vld [vmem:[#allocation2 + $0x100] sm:$0xff]
      %v370 = vld [vmem:[#allocation2 + $0x108] sm:$0xff]
      %v371 = vld [vmem:[#allocation2 + $0x110] sm:$0xff]
      %v372 = vld [vmem:[#allocation2 + $0x118] sm:$0xff]
      %v373 = vld [vmem:[#allocation2 + $0x120] sm:$0xff]
      %v374 = vld [vmem:[#allocation2 + $0x128] sm:$0xff]
      %v375 = vld [vmem:[#allocation2 + $0x130] sm:$0xff]
      %v376 = vld [vmem:[#allocation2 + $0x138] sm:$0xff]
      %v377 = vld [vmem:[#allocation2 + $0x140] sm:$0xff]
      %v378 = vld [vmem:[#allocation2 + $0x148] sm:$0xff]
      %v379 = vld [vmem:[#allocation2 + $0x150] sm:$0xff]
      %v380 = vld [vmem:[#allocation2 + $0x158] sm:$0xff]
      %v381 = vld [vmem:[#allocation2 + $0x160] sm:$0xff]
      %v382 = vld [vmem:[#allocation2 + $0x168] sm:$0xff]
      %v383 = vld [vmem:[#allocation2 + $0x170] sm:$0xff]
      %v384 = vld [vmem:[#allocation2 + $0x178] sm:$0xff]
      %v385 = vld [vmem:[#allocation2 + $0x180] sm:$0xff]
      %v386 = vld [vmem:[#allocation2 + $0x188] sm:$0xff]
      %v387 = vld [vmem:[#allocation2 + $0x190] sm:$0xff]
      %v388 = vld [vmem:[#allocation2 + $0x198] sm:$0xff]
      %v389 = vld [vmem:[#allocation2 + $0x1a0] sm:$0xff]
      %v390 = vld [vmem:[#allocation2 + $0x1a8] sm:$0xff]
      %v391 = vld [vmem:[#allocation2 + $0x1b0] sm:$0xff]
      %v392 = vld [vmem:[#allocation2 + $0x1b8] sm:$0xff]
      %v393 = vld [vmem:[#allocation2 + $0x1c0] sm:$0xff]
      %v394 = vld [vmem:[#allocation2 + $0x1c8] sm:$0xff]
      %v395 = vld [vmem:[#allocation2 + $0x1d0] sm:$0xff]
      %v396 = vld [vmem:[#allocation2 + $0x1d8] sm:$0xff]
      %v397 = vld [vmem:[#allocation2 + $0x1e0] sm:$0xff]
      %v398 = vld [vmem:[#allocation2 + $0x1e8] sm:$0xff]
      %v399 = vld [vmem:[#allocation2 + $0x1f0] sm:$0xff]
      %v400 = vld [vmem:[#allocation2 + $0x1f8] sm:$0xff]
      %v401 = vld [vmem:[%s243] sm:$0xff]
      %v402 = vld [vmem:[%s243 + $0x8] sm:$0xff]
      %v403 = vld [vmem:[%s243 + $0x10] sm:$0xff]
      %v404 = vld [vmem:[%s243 + $0x18] sm:$0xff]
      %v405 = vld [vmem:[%s243 + $0x20] sm:$0xff]
      %v406 = vld [vmem:[%s243 + $0x28] sm:$0xff]
      %v407 = vld [vmem:[%s243 + $0x30] sm:$0xff]
      %v408 = vld [vmem:[%s243 + $0x38] sm:$0xff]
      %v409 = vld [vmem:[%s243 + $0x40] sm:$0xff]
      %v410 = vld [vmem:[%s243 + $0x48] sm:$0xff]
      %v411 = vld [vmem:[%s243 + $0x50] sm:$0xff]
      %v412 = vld [vmem:[%s243 + $0x58] sm:$0xff]
      %v413 = vld [vmem:[%s243 + $0x60] sm:$0xff]
      %v414 = vld [vmem:[%s243 + $0x68] sm:$0xff]
      %v415 = vld [vmem:[%s243 + $0x70] sm:$0xff]
      %v416 = vld [vmem:[%s243 + $0x78] sm:$0xff]
      %v417 = vld [vmem:[%s243 + $0x80] sm:$0xff]
      %v418 = vld [vmem:[%s243 + $0x88] sm:$0xff]
      %v419 = vld [vmem:[%s243 + $0x90] sm:$0xff]
      %v420 = vld [vmem:[%s243 + $0x98] sm:$0xff]
      %v421 = vld [vmem:[%s243 + $0xa0] sm:$0xff]
      %v422 = vld [vmem:[%s243 + $0xa8] sm:$0xff]
      %v423 = vld [vmem:[%s243 + $0xb0] sm:$0xff]
      %v424 = vld [vmem:[%s243 + $0xb8] sm:$0xff]
      %v425 = vld [vmem:[%s243 + $0xc0] sm:$0xff]
      %v426 = vld [vmem:[%s243 + $0xc8] sm:$0xff]
      %v427 = vld [vmem:[%s243 + $0xd0] sm:$0xff]
      %v428 = vld [vmem:[%s243 + $0xd8] sm:$0xff]
      %v429 = vld [vmem:[%s243 + $0xe0] sm:$0xff]
      %v430 = vld [vmem:[%s243 + $0xe8] sm:$0xff]
      %v431 = vld [vmem:[%s243 + $0xf0] sm:$0xff]
      %v432 = vld [vmem:[%s243 + $0xf8] sm:$0xff]
      %v433 = vld [vmem:[%s243 + $0x100] sm:$0xff]
      %v434 = vld [vmem:[%s243 + $0x108] sm:$0xff]
      %v435 = vld [vmem:[%s243 + $0x110] sm:$0xff]
      %v436 = vld [vmem:[%s243 + $0x118] sm:$0xff]
      %v437 = vld [vmem:[%s243 + $0x120] sm:$0xff]
      %v438 = vld [vmem:[%s243 + $0x128] sm:$0xff]
      %v439 = vld [vmem:[%s243 + $0x130] sm:$0xff]
      %v440 = vld [vmem:[%s243 + $0x138] sm:$0xff]
      %v441 = vld [vmem:[%s243 + $0x140] sm:$0xff]
      %v442 = vld [vmem:[%s243 + $0x148] sm:$0xff]
      %v443 = vld [vmem:[%s243 + $0x150] sm:$0xff]
      %v444 = vld [vmem:[%s243 + $0x158] sm:$0xff]
      %v445 = vld [vmem:[%s243 + $0x160] sm:$0xff]
      %v446 = vld [vmem:[%s243 + $0x168] sm:$0xff]
      %v447 = vld [vmem:[%s243 + $0x170] sm:$0xff]
      %v448 = vld [vmem:[%s243 + $0x178] sm:$0xff]
      %v449 = vld [vmem:[%s243 + $0x180] sm:$0xff]
      %v450 = vld [vmem:[%s243 + $0x188] sm:$0xff]
      %v451 = vld [vmem:[%s243 + $0x190] sm:$0xff]
      %v452 = vld [vmem:[%s243 + $0x198] sm:$0xff]
      %v453 = vld [vmem:[%s243 + $0x1a0] sm:$0xff]
      %v454 = vld [vmem:[%s243 + $0x1a8] sm:$0xff]
      %v455 = vld [vmem:[%s243 + $0x1b0] sm:$0xff]
      %v456 = vld [vmem:[%s243 + $0x1b8] sm:$0xff]
      %v457 = vld [vmem:[%s243 + $0x1c0] sm:$0xff]
      %v458 = vld [vmem:[%s243 + $0x1c8] sm:$0xff]
      %v459 = vld [vmem:[%s243 + $0x1d0] sm:$0xff]
      %v460 = vld [vmem:[%s243 + $0x1d8] sm:$0xff]
      %v461 = vld [vmem:[%s243 + $0x1e0] sm:$0xff]
      %v462 = vld [vmem:[%s243 + $0x1e8] sm:$0xff]
      %v463 = vld [vmem:[%s243 + $0x1f0] sm:$0xff]
      %v464 = vld [vmem:[%s243 + $0x1f8] sm:$0xff]
      %v465 = vld [vmem:[%s253] sm:$0xf]
      %v466 = vld [vmem:[%s253 + $0x4] sm:$0xf]
      %v467 = vld [vmem:[%s253 + $0x8] sm:$0xf]
      %v468 = vld [vmem:[%s253 + $0xc] sm:$0xf]
      %v469 = vld [vmem:[%s253 + $0x10] sm:$0xf]
      %v470 = vld [vmem:[%s253 + $0x14] sm:$0xf]
      %v471 = vld [vmem:[%s253 + $0x18] sm:$0xf]
      %v472 = vld [vmem:[%s253 + $0x1c] sm:$0xf]
      %v473 = vld [vmem:[%s253 + $0x20] sm:$0xf]
      %v474 = vld [vmem:[%s253 + $0x24] sm:$0xf]
      %v475 = vld [vmem:[%s253 + $0x28] sm:$0xf]
      %v476 = vld [vmem:[%s253 + $0x2c] sm:$0xf]
      %v477 = vld [vmem:[%s253 + $0x30] sm:$0xf]
      %v478 = vld [vmem:[%s253 + $0x34] sm:$0xf]
      %v479 = vld [vmem:[%s253 + $0x38] sm:$0xf]
      %v480 = vld [vmem:[%s253 + $0x3c] sm:$0xf]
      %v481 = vld [vmem:[%s253 + $0x40] sm:$0xf]
      %v482 = vld [vmem:[%s253 + $0x44] sm:$0xf]
      %v483 = vld [vmem:[%s253 + $0x48] sm:$0xf]
      %v484 = vld [vmem:[%s253 + $0x4c] sm:$0xf]
      %v549 = vunpack.c.l.b16 %v401
      %v550 = vunpack.c.h.b16 %v401
      %v551 = vunpack.c.l.b16 %v402
      %v552 = vunpack.c.h.b16 %v402
      %v553 = vunpack.c.l.b16 %v403
      %v554 = vunpack.c.h.b16 %v403
      %v555 = vunpack.c.l.b16 %v404
      %v556 = vunpack.c.h.b16 %v404
      %v557 = vunpack.c.l.b16 %v405
      %v558 = vunpack.c.h.b16 %v405
      %v559 = vunpack.c.l.b16 %v406
      %v560 = vunpack.c.h.b16 %v406
      %v561 = vunpack.c.l.b16 %v407
      %v562 = vunpack.c.h.b16 %v407
      %v563 = vunpack.c.l.b16 %v408
      %v564 = vunpack.c.h.b16 %v408
      %v565 = vunpack.c.l.b16 %v409
      %v566 = vunpack.c.h.b16 %v409
      %v567 = vunpack.c.l.b16 %v410
      %v568 = vunpack.c.h.b16 %v410
      %v569 = vunpack.c.l.b16 %v411
      %v570 = vunpack.c.h.b16 %v411
      %v571 = vunpack.c.l.b16 %v412
      %v572 = vunpack.c.h.b16 %v412
      %v573 = vunpack.c.l.b16 %v413
      %v574 = vunpack.c.h.b16 %v413
      %v575 = vunpack.c.l.b16 %v414
      %v576 = vunpack.c.h.b16 %v414
      %v577 = vunpack.c.l.b16 %v415
      %v578 = vunpack.c.h.b16 %v415
      %v579 = vunpack.c.l.b16 %v416
      %v580 = vunpack.c.h.b16 %v416
      %v581 = vunpack.c.l.b16 %v417
      %v582 = vunpack.c.h.b16 %v417
      %v583 = vunpack.c.l.b16 %v418
      %v584 = vunpack.c.h.b16 %v418
      %v585 = vunpack.c.l.b16 %v419
      %v586 = vunpack.c.h.b16 %v419
      %v587 = vunpack.c.l.b16 %v420
      %v588 = vunpack.c.h.b16 %v420
      %v589 = vunpack.c.l.b16 %v421
      %v590 = vunpack.c.h.b16 %v421
      %v591 = vunpack.c.l.b16 %v422
      %v592 = vunpack.c.h.b16 %v422
      %v593 = vunpack.c.l.b16 %v423
      %v594 = vunpack.c.h.b16 %v423
      %v595 = vunpack.c.l.b16 %v424
      %v596 = vunpack.c.h.b16 %v424
      %v597 = vunpack.c.l.b16 %v425
      %v598 = vunpack.c.h.b16 %v425
      %v599 = vunpack.c.l.b16 %v426
      %v600 = vunpack.c.h.b16 %v426
      %v601 = vunpack.c.l.b16 %v427
      %v602 = vunpack.c.h.b16 %v427
      %v603 = vunpack.c.l.b16 %v428
      %v604 = vunpack.c.h.b16 %v428
      %v605 = vunpack.c.l.b16 %v429
      %v606 = vunpack.c.h.b16 %v429
      %v607 = vunpack.c.l.b16 %v430
      %v608 = vunpack.c.h.b16 %v430
      %v609 = vunpack.c.l.b16 %v431
      %v610 = vunpack.c.h.b16 %v431
      %v611 = vunpack.c.l.b16 %v432
      %v612 = vunpack.c.h.b16 %v432
      %v613 = vunpack.c.l.b16 %v433
      %v614 = vunpack.c.h.b16 %v433
      %v615 = vunpack.c.l.b16 %v434
      %v616 = vunpack.c.h.b16 %v434
      %v617 = vunpack.c.l.b16 %v435
      %v618 = vunpack.c.h.b16 %v435
      %v619 = vunpack.c.l.b16 %v436
      %v620 = vunpack.c.h.b16 %v436
      %v621 = vunpack.c.l.b16 %v437
      %v622 = vunpack.c.h.b16 %v437
      %v623 = vunpack.c.l.b16 %v438
      %v624 = vunpack.c.h.b16 %v438
      %v625 = vunpack.c.l.b16 %v439
      %v626 = vunpack.c.h.b16 %v439
      %v627 = vunpack.c.l.b16 %v440
      %v628 = vunpack.c.h.b16 %v440
      %v629 = vunpack.c.l.b16 %v441
      %v630 = vunpack.c.h.b16 %v441
      %v631 = vunpack.c.l.b16 %v442
      %v632 = vunpack.c.h.b16 %v442
      %v633 = vunpack.c.l.b16 %v443
      %v634 = vunpack.c.h.b16 %v443
      %v635 = vunpack.c.l.b16 %v444
      %v636 = vunpack.c.h.b16 %v444
      %v637 = vunpack.c.l.b16 %v445
      %v638 = vunpack.c.h.b16 %v445
      %v639 = vunpack.c.l.b16 %v446
      %v640 = vunpack.c.h.b16 %v446
      %v641 = vunpack.c.l.b16 %v447
      %v642 = vunpack.c.h.b16 %v447
      %v643 = vunpack.c.l.b16 %v448
      %v644 = vunpack.c.h.b16 %v448
      %v645 = vunpack.c.l.b16 %v449
      %v646 = vunpack.c.h.b16 %v449
      %v647 = vunpack.c.l.b16 %v450
      %v648 = vunpack.c.h.b16 %v450
      %v649 = vunpack.c.l.b16 %v451
      %v650 = vunpack.c.h.b16 %v451
      %v651 = vunpack.c.l.b16 %v452
      %v652 = vunpack.c.h.b16 %v452
      %v653 = vunpack.c.l.b16 %v453
      %v654 = vunpack.c.h.b16 %v453
      %v655 = vunpack.c.l.b16 %v454
      %v656 = vunpack.c.h.b16 %v454
      %v657 = vunpack.c.l.b16 %v455
      %v658 = vunpack.c.h.b16 %v455
      %v659 = vunpack.c.l.b16 %v456
      %v660 = vunpack.c.h.b16 %v456
      %v661 = vunpack.c.l.b16 %v457
      %v662 = vunpack.c.h.b16 %v457
      %v663 = vunpack.c.l.b16 %v458
      %v664 = vunpack.c.h.b16 %v458
      %v665 = vunpack.c.l.b16 %v459
      %v666 = vunpack.c.h.b16 %v459
      %v667 = vunpack.c.l.b16 %v460
      %v668 = vunpack.c.h.b16 %v460
      %v669 = vunpack.c.l.b16 %v461
      %v670 = vunpack.c.h.b16 %v461
      %v671 = vunpack.c.l.b16 %v462
      %v672 = vunpack.c.h.b16 %v462
      %v673 = vunpack.c.l.b16 %v463
      %v674 = vunpack.c.h.b16 %v463
      %v675 = vunpack.c.l.b16 %v464
      %v676 = vunpack.c.h.b16 %v464
      %v677 = vpack.c.b16 %v551, %v549
      %v678 = vpack.c.b16 %v552, %v550
      %v679 = vpack.c.b16 %v555, %v553
      %v680 = vpack.c.b16 %v556, %v554
      %v681 = vpack.c.b16 %v559, %v557
      %v682 = vpack.c.b16 %v560, %v558
      %v683 = vpack.c.b16 %v563, %v561
      %v684 = vpack.c.b16 %v564, %v562
      %v685 = vpack.c.b16 %v567, %v565
      %v686 = vpack.c.b16 %v568, %v566
      %v687 = vpack.c.b16 %v571, %v569
      %v688 = vpack.c.b16 %v572, %v570
      %v689 = vpack.c.b16 %v575, %v573
      %v690 = vpack.c.b16 %v576, %v574
      %v691 = vpack.c.b16 %v579, %v577
      %v692 = vpack.c.b16 %v580, %v578
      %v693 = vpack.c.b16 %v583, %v581
      %v694 = vpack.c.b16 %v584, %v582
      %v695 = vpack.c.b16 %v587, %v585
      %v696 = vpack.c.b16 %v588, %v586
      %v697 = vpack.c.b16 %v591, %v589
      %v698 = vpack.c.b16 %v592, %v590
      %v699 = vpack.c.b16 %v595, %v593
      %v700 = vpack.c.b16 %v596, %v594
      %v701 = vpack.c.b16 %v599, %v597
      %v702 = vpack.c.b16 %v600, %v598
      %v703 = vpack.c.b16 %v603, %v601
      %v704 = vpack.c.b16 %v604, %v602
      %v705 = vpack.c.b16 %v607, %v605
      %v706 = vpack.c.b16 %v608, %v606
      %v707 = vpack.c.b16 %v611, %v609
      %v708 = vpack.c.b16 %v612, %v610
      %v709 = vpack.c.b16 %v615, %v613
      %v710 = vpack.c.b16 %v616, %v614
      %v711 = vpack.c.b16 %v619, %v617
      %v712 = vpack.c.b16 %v620, %v618
      %v713 = vpack.c.b16 %v623, %v621
      %v714 = vpack.c.b16 %v624, %v622
      %v715 = vpack.c.b16 %v627, %v625
      %v716 = vpack.c.b16 %v628, %v626
      %v717 = vpack.c.b16 %v631, %v629
      %v718 = vpack.c.b16 %v632, %v630
      %v719 = vpack.c.b16 %v635, %v633
      %v720 = vpack.c.b16 %v636, %v634
      %v721 = vpack.c.b16 %v639, %v637
      %v722 = vpack.c.b16 %v640, %v638
      %v723 = vpack.c.b16 %v643, %v641
      %v724 = vpack.c.b16 %v644, %v642
      %v725 = vpack.c.b16 %v647, %v645
      %v726 = vpack.c.b16 %v648, %v646
      %v727 = vpack.c.b16 %v651, %v649
      %v728 = vpack.c.b16 %v652, %v650
      %v729 = vpack.c.b16 %v655, %v653
      %v730 = vpack.c.b16 %v656, %v654
      %v731 = vpack.c.b16 %v659, %v657
      %v732 = vpack.c.b16 %v660, %v658
      %v733 = vpack.c.b16 %v663, %v661
      %v734 = vpack.c.b16 %v664, %v662
      %v735 = vpack.c.b16 %v667, %v665
      %v736 = vpack.c.b16 %v668, %v666
      %v737 = vpack.c.b16 %v671, %v669
      %v738 = vpack.c.b16 %v672, %v670
      %v739 = vpack.c.b16 %v675, %v673
      %v740 = vpack.c.b16 %v676, %v674
      %v793 = vunpack.c.l.b16 %v465
      %v794 = vunpack.c.l.b16 %v466
      %v795 = vunpack.c.l.b16 %v467
      %v796 = vunpack.c.l.b16 %v468
      %v797 = vunpack.c.l.b16 %v469
      %v798 = vunpack.c.l.b16 %v470
      %v799 = vunpack.c.l.b16 %v471
      %v800 = vunpack.c.l.b16 %v472
      %v801 = vunpack.c.l.b16 %v473
      %v802 = vunpack.c.l.b16 %v474
      %v803 = vunpack.c.l.b16 %v475
      %v804 = vunpack.c.l.b16 %v476
      %v805 = vunpack.c.l.b16 %v477
      %v806 = vunpack.c.l.b16 %v478
      %v807 = vunpack.c.l.b16 %v479
      %v808 = vunpack.c.l.b16 %v480
      %v809 = vunpack.c.l.b16 %v481
      %v810 = vunpack.c.l.b16 %v482
      %v811 = vunpack.c.l.b16 %v483
      %v812 = vunpack.c.l.b16 %v484
      %v813 = vpack.c.b16 %v794, %v793
      %v814 = vpack.c.b16 %v796, %v795
      %v815 = vpack.c.b16 %v798, %v797
      %v816 = vpack.c.b16 %v800, %v799
      %v817 = vpack.c.b16 %v802, %v801
      %v818 = vpack.c.b16 %v804, %v803
      %v819 = vpack.c.b16 %v806, %v805
      %v820 = vpack.c.b16 %v808, %v807
      %v821 = vpack.c.b16 %v810, %v809
      %v822 = vpack.c.b16 %v812, %v811
      %vm833 = vcmask 261120
      %v835 = vsel %vm833, %v678, 0
      %v838 = vsel %vm833, %v680, 0
      %v841 = vsel %vm833, %v682, 0
      %v844 = vsel %vm833, %v684, 0
      %v847 = vsel %vm833, %v686, 0
      %v850 = vsel %vm833, %v688, 0
      %v853 = vsel %vm833, %v690, 0
      %v856 = vsel %vm833, %v692, 0
      %v859 = vsel %vm833, %v694, 0
      %v862 = vsel %vm833, %v696, 0
      %v865 = vsel %vm833, %v698, 0
      %v868 = vsel %vm833, %v700, 0
      %v871 = vsel %vm833, %v702, 0
      %v874 = vsel %vm833, %v704, 0
      %v877 = vsel %vm833, %v706, 0
      %v880 = vsel %vm833, %v708, 0
      %v883 = vsel %vm833, %v710, 0
      %v886 = vsel %vm833, %v712, 0
      %v889 = vsel %vm833, %v714, 0
      %v892 = vsel %vm833, %v716, 0
      %v895 = vsel %vm833, %v718, 0
      %v898 = vsel %vm833, %v720, 0
      %v901 = vsel %vm833, %v722, 0
      %v904 = vsel %vm833, %v724, 0
      %v907 = vsel %vm833, %v726, 0
      %v910 = vsel %vm833, %v728, 0
      %v913 = vsel %vm833, %v730, 0
      %v916 = vsel %vm833, %v732, 0
      %v919 = vsel %vm833, %v734, 0
      %v922 = vsel %vm833, %v736, 0
      %v925 = vsel %vm833, %v738, 0
      %v928 = vsel %vm833, %v740, 0
      %930 = vmatprep.subr.bf16.mxu0 0
      %931 = vmatpush1.bf16.msra.mxu0 %v820
      %932 = vmatprep.subr.bf16.mxu0 0
      %933 = vmatpush1.bf16.msra.mxu0 %v819
      %934 = vmatprep.subr.bf16.mxu0 0
      %935 = vmatpush1.bf16.msra.mxu0 %v818
      %936 = vmatprep.subr.bf16.mxu0 0
      %937 = vmatpush1.bf16.msra.mxu0 %v817
      %938 = vmatprep.subr.bf16.mxu0 0
      %939 = vmatpush1.bf16.msra.mxu0 %v816
      %940 = vmatprep.subr.bf16.mxu0 0
      %941 = vmatpush1.bf16.msra.mxu0 %v815
      %942 = vmatprep.subr.bf16.mxu0 0
      %943 = vmatpush1.bf16.msra.mxu0 %v814
      %944 = vmatprep.subr.bf16.mxu0 0
      %945 = vmatpush1.bf16.msra.mxu0 %v813
      %946 = vmatprep.subr.bf16.mxu0 0
      %947 = vmatpush2.bf16.msra.mxu0 0
      %948 = vmatprep.subr.bf16.mxu0 0
      %949 = vmatpush2.bf16.msra.mxu0 0
      %950 = vmatprep.subr.bf16.mxu0 0
      %951 = vmatpush2.bf16.msra.mxu0 0
      %952 = vmatprep.subr.bf16.mxu0 0
      %953 = vmatpush2.bf16.msra.mxu0 0
      %954 = vmatprep.subr.bf16.mxu0 0
      %955 = vmatpush2.bf16.msra.mxu0 0
      %956 = vmatprep.subr.bf16.mxu0 0
      %957 = vmatpush2.bf16.msra.mxu0 0
      %958 = vmatprep.subr.bf16.mxu0 0
      %959 = vmatpush2.bf16.msra.mxu0 %v822
      %960 = vmatprep.subr.bf16.mxu0 0
      %961 = vmatpush2.bf16.msra.mxu0 %v821
      %962 = vmatprep.mubr.bf16.mxu0 %v835
      %963 = vmatmul.mubr.bf16.gmra.mxu0 %v677
      %v964 = vpop.f32.mrf.mxu0
      %v965 = vadd.f32 0.0, %v964
      %v966 = vpop.f32.mrf.mxu0
      %v967 = vpop.f32.mrf.mxu0
      %v968 = vadd.f32 0.0, %v967
      %v969 = vpop.f32.mrf.mxu0
      %970 = vmatprep.mubr.bf16.mxu0 %v838
      %971 = vmatmul.mubr.bf16.gmra.mxu0 %v679
      %v972 = vpop.f32.mrf.mxu0
      %v973 = vadd.f32 0.0, %v972
      %v974 = vpop.f32.mrf.mxu0
      %v975 = vpop.f32.mrf.mxu0
      %v976 = vadd.f32 0.0, %v975
      %v977 = vpop.f32.mrf.mxu0
      %978 = vmatprep.mubr.bf16.mxu0 %v841
      %979 = vmatmul.mubr.bf16.gmra.mxu0 %v681
      %v980 = vpop.f32.mrf.mxu0
      %v981 = vadd.f32 0.0, %v980
      %v982 = vpop.f32.mrf.mxu0
      %v983 = vpop.f32.mrf.mxu0
      %v984 = vadd.f32 0.0, %v983
      %v985 = vpop.f32.mrf.mxu0
      %986 = vmatprep.mubr.bf16.mxu0 %v844
      %987 = vmatmul.mubr.bf16.gmra.mxu0 %v683
      %v988 = vpop.f32.mrf.mxu0
      %v989 = vadd.f32 0.0, %v988
      %v990 = vpop.f32.mrf.mxu0
      %v991 = vpop.f32.mrf.mxu0
      %v992 = vadd.f32 0.0, %v991
      %v993 = vpop.f32.mrf.mxu0
      %994 = vmatprep.mubr.bf16.mxu0 %v847
      %995 = vmatmul.mubr.bf16.gmra.mxu0 %v685
      %v996 = vpop.f32.mrf.mxu0
      %v997 = vadd.f32 0.0, %v996
      %v998 = vpop.f32.mrf.mxu0
      %v999 = vpop.f32.mrf.mxu0
      %v1000 = vadd.f32 0.0, %v999
      %v1001 = vpop.f32.mrf.mxu0
      %1002 = vmatprep.mubr.bf16.mxu0 %v850
      %1003 = vmatmul.mubr.bf16.gmra.mxu0 %v687
      %v1004 = vpop.f32.mrf.mxu0
      %v1005 = vadd.f32 0.0, %v1004
      %v1006 = vpop.f32.mrf.mxu0
      %v1007 = vpop.f32.mrf.mxu0
      %v1008 = vadd.f32 0.0, %v1007
      %v1009 = vpop.f32.mrf.mxu0
      %1010 = vmatprep.mubr.bf16.mxu0 %v853
      %1011 = vmatmul.mubr.bf16.gmra.mxu0 %v689
      %v1012 = vpop.f32.mrf.mxu0
      %v1013 = vadd.f32 0.0, %v1012
      %v1014 = vpop.f32.mrf.mxu0
      %v1015 = vpop.f32.mrf.mxu0
      %v1016 = vadd.f32 0.0, %v1015
      %v1017 = vpop.f32.mrf.mxu0
      %1018 = vmatprep.mubr.bf16.mxu0 %v856
      %1019 = vmatmul.mubr.bf16.gmra.mxu0 %v691
      %v1020 = vpop.f32.mrf.mxu0
      %v1021 = vadd.f32 0.0, %v1020
      %v1022 = vpop.f32.mrf.mxu0
      %v1023 = vpop.f32.mrf.mxu0
      %v1024 = vadd.f32 0.0, %v1023
      %v1025 = vpop.f32.mrf.mxu0
      %1026 = vmatprep.mubr.bf16.mxu0 %v859
      %1027 = vmatmul.mubr.bf16.gmra.mxu0 %v693
      %v1028 = vpop.f32.mrf.mxu0
      %v1029 = vadd.f32 0.0, %v1028
      %v1030 = vpop.f32.mrf.mxu0
      %v1031 = vpop.f32.mrf.mxu0
      %v1032 = vadd.f32 0.0, %v1031
      %v1033 = vpop.f32.mrf.mxu0
      %1034 = vmatprep.mubr.bf16.mxu0 %v862
      %1035 = vmatmul.mubr.bf16.gmra.mxu0 %v695
      %v1036 = vpop.f32.mrf.mxu0
      %v1037 = vadd.f32 0.0, %v1036
      %v1038 = vpop.f32.mrf.mxu0
      %v1039 = vpop.f32.mrf.mxu0
      %v1040 = vadd.f32 0.0, %v1039
      %v1041 = vpop.f32.mrf.mxu0
      %1042 = vmatprep.mubr.bf16.mxu0 %v865
      %1043 = vmatmul.mubr.bf16.gmra.mxu0 %v697
      %v1044 = vpop.f32.mrf.mxu0
      %v1045 = vadd.f32 0.0, %v1044
      %v1046 = vpop.f32.mrf.mxu0
      %v1047 = vpop.f32.mrf.mxu0
      %v1048 = vadd.f32 0.0, %v1047
      %v1049 = vpop.f32.mrf.mxu0
      %1050 = vmatprep.mubr.bf16.mxu0 %v868
      %1051 = vmatmul.mubr.bf16.gmra.mxu0 %v699
      %v1052 = vpop.f32.mrf.mxu0
      %v1053 = vadd.f32 0.0, %v1052
      %v1054 = vpop.f32.mrf.mxu0
      %v1055 = vpop.f32.mrf.mxu0
      %v1056 = vadd.f32 0.0, %v1055
      %v1057 = vpop.f32.mrf.mxu0
      %1058 = vmatprep.mubr.bf16.mxu0 %v871
      %1059 = vmatmul.mubr.bf16.gmra.mxu0 %v701
      %v1060 = vpop.f32.mrf.mxu0
      %v1061 = vadd.f32 0.0, %v1060
      %v1062 = vpop.f32.mrf.mxu0
      %v1063 = vpop.f32.mrf.mxu0
      %v1064 = vadd.f32 0.0, %v1063
      %v1065 = vpop.f32.mrf.mxu0
      %1066 = vmatprep.mubr.bf16.mxu0 %v874
      %1067 = vmatmul.mubr.bf16.gmra.mxu0 %v703
      %v1068 = vpop.f32.mrf.mxu0
      %v1069 = vadd.f32 0.0, %v1068
      %v1070 = vpop.f32.mrf.mxu0
      %v1071 = vpop.f32.mrf.mxu0
      %v1072 = vadd.f32 0.0, %v1071
      %v1073 = vpop.f32.mrf.mxu0
      %1074 = vmatprep.mubr.bf16.mxu0 %v877
      %1075 = vmatmul.mubr.bf16.gmra.mxu0 %v705
      %v1076 = vpop.f32.mrf.mxu0
      %v1077 = vadd.f32 0.0, %v1076
      %v1078 = vpop.f32.mrf.mxu0
      %v1079 = vpop.f32.mrf.mxu0
      %v1080 = vadd.f32 0.0, %v1079
      %v1081 = vpop.f32.mrf.mxu0
      %1082 = vmatprep.mubr.bf16.mxu0 %v880
      %1083 = vmatmul.mubr.bf16.gmra.mxu0 %v707
      %v1084 = vpop.f32.mrf.mxu0
      %v1085 = vadd.f32 0.0, %v1084
      %v1086 = vpop.f32.mrf.mxu0
      %v1087 = vpop.f32.mrf.mxu0
      %v1088 = vadd.f32 0.0, %v1087
      %v1089 = vpop.f32.mrf.mxu0
      %1090 = vmatprep.mubr.bf16.mxu0 %v883
      %1091 = vmatmul.mubr.bf16.gmra.mxu0 %v709
      %v1092 = vpop.f32.mrf.mxu0
      %v1093 = vadd.f32 0.0, %v1092
      %v1094 = vpop.f32.mrf.mxu0
      %v1095 = vpop.f32.mrf.mxu0
      %v1096 = vadd.f32 0.0, %v1095
      %v1097 = vpop.f32.mrf.mxu0
      %1098 = vmatprep.mubr.bf16.mxu0 %v886
      %1099 = vmatmul.mubr.bf16.gmra.mxu0 %v711
      %v1100 = vpop.f32.mrf.mxu0
      %v1101 = vadd.f32 0.0, %v1100
      %v1102 = vpop.f32.mrf.mxu0
      %v1103 = vpop.f32.mrf.mxu0
      %v1104 = vadd.f32 0.0, %v1103
      %v1105 = vpop.f32.mrf.mxu0
      %1106 = vmatprep.mubr.bf16.mxu0 %v889
      %1107 = vmatmul.mubr.bf16.gmra.mxu0 %v713
      %v1108 = vpop.f32.mrf.mxu0
      %v1109 = vadd.f32 0.0, %v1108
      %v1110 = vpop.f32.mrf.mxu0
      %v1111 = vpop.f32.mrf.mxu0
      %v1112 = vadd.f32 0.0, %v1111
      %v1113 = vpop.f32.mrf.mxu0
      %1114 = vmatprep.mubr.bf16.mxu0 %v892
      %1115 = vmatmul.mubr.bf16.gmra.mxu0 %v715
      %v1116 = vpop.f32.mrf.mxu0
      %v1117 = vadd.f32 0.0, %v1116
      %v1118 = vpop.f32.mrf.mxu0
      %v1119 = vpop.f32.mrf.mxu0
      %v1120 = vadd.f32 0.0, %v1119
      %v1121 = vpop.f32.mrf.mxu0
      %1122 = vmatprep.mubr.bf16.mxu0 %v895
      %1123 = vmatmul.mubr.bf16.gmra.mxu0 %v717
      %v1124 = vpop.f32.mrf.mxu0
      %v1125 = vadd.f32 0.0, %v1124
      %v1126 = vpop.f32.mrf.mxu0
      %v1127 = vpop.f32.mrf.mxu0
      %v1128 = vadd.f32 0.0, %v1127
      %v1129 = vpop.f32.mrf.mxu0
      %1130 = vmatprep.mubr.bf16.mxu0 %v898
      %1131 = vmatmul.mubr.bf16.gmra.mxu0 %v719
      %v1132 = vpop.f32.mrf.mxu0
      %v1133 = vadd.f32 0.0, %v1132
      %v1134 = vpop.f32.mrf.mxu0
      %v1135 = vpop.f32.mrf.mxu0
      %v1136 = vadd.f32 0.0, %v1135
      %v1137 = vpop.f32.mrf.mxu0
      %1138 = vmatprep.mubr.bf16.mxu0 %v901
      %1139 = vmatmul.mubr.bf16.gmra.mxu0 %v721
      %v1140 = vpop.f32.mrf.mxu0
      %v1141 = vadd.f32 0.0, %v1140
      %v1142 = vpop.f32.mrf.mxu0
      %v1143 = vpop.f32.mrf.mxu0
      %v1144 = vadd.f32 0.0, %v1143
      %v1145 = vpop.f32.mrf.mxu0
      %1146 = vmatprep.mubr.bf16.mxu0 %v904
      %1147 = vmatmul.mubr.bf16.gmra.mxu0 %v723
      %v1148 = vpop.f32.mrf.mxu0
      %v1149 = vadd.f32 0.0, %v1148
      %v1150 = vpop.f32.mrf.mxu0
      %v1151 = vpop.f32.mrf.mxu0
      %v1152 = vadd.f32 0.0, %v1151
      %v1153 = vpop.f32.mrf.mxu0
      %1154 = vmatprep.mubr.bf16.mxu0 %v907
      %1155 = vmatmul.mubr.bf16.gmra.mxu0 %v725
      %v1156 = vpop.f32.mrf.mxu0
      %v1157 = vadd.f32 0.0, %v1156
      %v1158 = vpop.f32.mrf.mxu0
      %v1159 = vpop.f32.mrf.mxu0
      %v1160 = vadd.f32 0.0, %v1159
      %v1161 = vpop.f32.mrf.mxu0
      %1162 = vmatprep.mubr.bf16.mxu0 %v910
      %1163 = vmatmul.mubr.bf16.gmra.mxu0 %v727
      %v1164 = vpop.f32.mrf.mxu0
      %v1165 = vadd.f32 0.0, %v1164
      %v1166 = vpop.f32.mrf.mxu0
      %v1167 = vpop.f32.mrf.mxu0
      %v1168 = vadd.f32 0.0, %v1167
      %v1169 = vpop.f32.mrf.mxu0
      %1170 = vmatprep.mubr.bf16.mxu0 %v913
      %1171 = vmatmul.mubr.bf16.gmra.mxu0 %v729
      %v1172 = vpop.f32.mrf.mxu0
      %v1173 = vadd.f32 0.0, %v1172
      %v1174 = vpop.f32.mrf.mxu0
      %v1175 = vpop.f32.mrf.mxu0
      %v1176 = vadd.f32 0.0, %v1175
      %v1177 = vpop.f32.mrf.mxu0
      %1178 = vmatprep.mubr.bf16.mxu0 %v916
      %1179 = vmatmul.mubr.bf16.gmra.mxu0 %v731
      %v1180 = vpop.f32.mrf.mxu0
      %v1181 = vadd.f32 0.0, %v1180
      %v1182 = vpop.f32.mrf.mxu0
      %v1183 = vpop.f32.mrf.mxu0
      %v1184 = vadd.f32 0.0, %v1183
      %v1185 = vpop.f32.mrf.mxu0
      %1186 = vmatprep.mubr.bf16.mxu0 %v919
      %1187 = vmatmul.mubr.bf16.gmra.mxu0 %v733
      %v1188 = vpop.f32.mrf.mxu0
      %v1189 = vadd.f32 0.0, %v1188
      %v1190 = vpop.f32.mrf.mxu0
      %v1191 = vpop.f32.mrf.mxu0
      %v1192 = vadd.f32 0.0, %v1191
      %v1193 = vpop.f32.mrf.mxu0
      %1194 = vmatprep.mubr.bf16.mxu0 %v922
      %1195 = vmatmul.mubr.bf16.gmra.mxu0 %v735
      %v1196 = vpop.f32.mrf.mxu0
      %v1197 = vadd.f32 0.0, %v1196
      %v1198 = vpop.f32.mrf.mxu0
      %v1199 = vpop.f32.mrf.mxu0
      %v1200 = vadd.f32 0.0, %v1199
      %v1201 = vpop.f32.mrf.mxu0
      %1202 = vmatprep.mubr.bf16.mxu0 %v925
      %1203 = vmatmul.mubr.bf16.gmra.mxu0 %v737
      %v1204 = vpop.f32.mrf.mxu0
      %v1205 = vadd.f32 0.0, %v1204
      %v1206 = vpop.f32.mrf.mxu0
      %v1207 = vpop.f32.mrf.mxu0
      %v1208 = vadd.f32 0.0, %v1207
      %v1209 = vpop.f32.mrf.mxu0
      %1210 = vmatprep.mubr.bf16.mxu0 %v928
      %1211 = vmatmul.mubr.bf16.gmra.mxu0 %v739
      %v1212 = vpop.f32.mrf.mxu0
      %v1213 = vadd.f32 0.0, %v1212
      %v1214 = vpop.f32.mrf.mxu0
      %v1215 = vpop.f32.mrf.mxu0
      %v1216 = vadd.f32 0.0, %v1215
      %v1217 = vpop.f32.mrf.mxu0
      %1218 = vdwg.mxu0
      %v1219 = vadd.f32 %v337, %v965
      %v1220 = vadd.f32 %v338, %v968
      %v1221 = vadd.f32 %v339, %v973
      %v1222 = vadd.f32 %v340, %v976
      %v1223 = vadd.f32 %v341, %v981
      %v1224 = vadd.f32 %v342, %v984
      %v1225 = vadd.f32 %v343, %v989
      %v1226 = vadd.f32 %v344, %v992
      %v1227 = vadd.f32 %v345, %v997
      %v1228 = vadd.f32 %v346, %v1000
      %v1229 = vadd.f32 %v347, %v1005
      %v1230 = vadd.f32 %v348, %v1008
      %v1231 = vadd.f32 %v349, %v1013
      %v1232 = vadd.f32 %v350, %v1016
      %v1233 = vadd.f32 %v351, %v1021
      %v1234 = vadd.f32 %v352, %v1024
      %v1235 = vadd.f32 %v353, %v1029
      %v1236 = vadd.f32 %v354, %v1032
      %v1237 = vadd.f32 %v355, %v1037
      %v1238 = vadd.f32 %v356, %v1040
      %v1239 = vadd.f32 %v357, %v1045
      %v1240 = vadd.f32 %v358, %v1048
      %v1241 = vadd.f32 %v359, %v1053
      %v1242 = vadd.f32 %v360, %v1056
      %v1243 = vadd.f32 %v361, %v1061
      %v1244 = vadd.f32 %v362, %v1064
      %v1245 = vadd.f32 %v363, %v1069
      %v1246 = vadd.f32 %v364, %v1072
      %v1247 = vadd.f32 %v365, %v1077
      %v1248 = vadd.f32 %v366, %v1080
      %v1249 = vadd.f32 %v367, %v1085
      %v1250 = vadd.f32 %v368, %v1088
      %v1251 = vadd.f32 %v369, %v1093
      %v1252 = vadd.f32 %v370, %v1096
      %v1253 = vadd.f32 %v371, %v1101
      %v1254 = vadd.f32 %v372, %v1104
      %v1255 = vadd.f32 %v373, %v1109
      %v1256 = vadd.f32 %v374, %v1112
      %v1257 = vadd.f32 %v375, %v1117
      %v1258 = vadd.f32 %v376, %v1120
      %v1259 = vadd.f32 %v377, %v1125
      %v1260 = vadd.f32 %v378, %v1128
      %v1261 = vadd.f32 %v379, %v1133
      %v1262 = vadd.f32 %v380, %v1136
      %v1263 = vadd.f32 %v381, %v1141
      %v1264 = vadd.f32 %v382, %v1144
      %v1265 = vadd.f32 %v383, %v1149
      %v1266 = vadd.f32 %v384, %v1152
      %v1267 = vadd.f32 %v385, %v1157
      %v1268 = vadd.f32 %v386, %v1160
      %v1269 = vadd.f32 %v387, %v1165
      %v1270 = vadd.f32 %v388, %v1168
      %v1271 = vadd.f32 %v389, %v1173
      %v1272 = vadd.f32 %v390, %v1176
      %v1273 = vadd.f32 %v391, %v1181
      %v1274 = vadd.f32 %v392, %v1184
      %v1275 = vadd.f32 %v393, %v1189
      %v1276 = vadd.f32 %v394, %v1192
      %v1277 = vadd.f32 %v395, %v1197
      %v1278 = vadd.f32 %v396, %v1200
      %v1279 = vadd.f32 %v397, %v1205
      %v1280 = vadd.f32 %v398, %v1208
      %v1281 = vadd.f32 %v399, %v1213
      %v1282 = vadd.f32 %v400, %v1216
      %vm1283 = vcmask 523264
      %1284 = vst.msk [vmem:[#allocation2] sm:$0xff] %vm1283, %v1219
      %1285 = vst.msk [vmem:[#allocation2 + $0x8] sm:$0xff] %vm1283, %v1220
      %1286 = vst.msk [vmem:[#allocation2 + $0x10] sm:$0xff] %vm1283, %v1221
      %1287 = vst.msk [vmem:[#allocation2 + $0x18] sm:$0xff] %vm1283, %v1222
      %1288 = vst.msk [vmem:[#allocation2 + $0x20] sm:$0xff] %vm1283, %v1223
      %1289 = vst.msk [vmem:[#allocation2 + $0x28] sm:$0xff] %vm1283, %v1224
      %1290 = vst.msk [vmem:[#allocation2 + $0x30] sm:$0xff] %vm1283, %v1225
      %1291 = vst.msk [vmem:[#allocation2 + $0x38] sm:$0xff] %vm1283, %v1226
      %1292 = vst.msk [vmem:[#allocation2 + $0x40] sm:$0xff] %vm1283, %v1227
      %1293 = vst.msk [vmem:[#allocation2 + $0x48] sm:$0xff] %vm1283, %v1228
      %1294 = vst.msk [vmem:[#allocation2 + $0x50] sm:$0xff] %vm1283, %v1229
      %1295 = vst.msk [vmem:[#allocation2 + $0x58] sm:$0xff] %vm1283, %v1230
      %1296 = vst.msk [vmem:[#allocation2 + $0x60] sm:$0xff] %vm1283, %v1231
      %1297 = vst.msk [vmem:[#allocation2 + $0x68] sm:$0xff] %vm1283, %v1232
      %1298 = vst.msk [vmem:[#allocation2 + $0x70] sm:$0xff] %vm1283, %v1233
      %1299 = vst.msk [vmem:[#allocation2 + $0x78] sm:$0xff] %vm1283, %v1234
      %1300 = vst.msk [vmem:[#allocation2 + $0x80] sm:$0xff] %vm1283, %v1235
      %1301 = vst.msk [vmem:[#allocation2 + $0x88] sm:$0xff] %vm1283, %v1236
      %1302 = vst.msk [vmem:[#allocation2 + $0x90] sm:$0xff] %vm1283, %v1237
      %1303 = vst.msk [vmem:[#allocation2 + $0x98] sm:$0xff] %vm1283, %v1238
      %1304 = vst.msk [vmem:[#allocation2 + $0xa0] sm:$0xff] %vm1283, %v1239
      %1305 = vst.msk [vmem:[#allocation2 + $0xa8] sm:$0xff] %vm1283, %v1240
      %1306 = vst.msk [vmem:[#allocation2 + $0xb0] sm:$0xff] %vm1283, %v1241
      %1307 = vst.msk [vmem:[#allocation2 + $0xb8] sm:$0xff] %vm1283, %v1242
      %1308 = vst.msk [vmem:[#allocation2 + $0xc0] sm:$0xff] %vm1283, %v1243
      %1309 = vst.msk [vmem:[#allocation2 + $0xc8] sm:$0xff] %vm1283, %v1244
      %1310 = vst.msk [vmem:[#allocation2 + $0xd0] sm:$0xff] %vm1283, %v1245
      %1311 = vst.msk [vmem:[#allocation2 + $0xd8] sm:$0xff] %vm1283, %v1246
      %1312 = vst.msk [vmem:[#allocation2 + $0xe0] sm:$0xff] %vm1283, %v1247
      %1313 = vst.msk [vmem:[#allocation2 + $0xe8] sm:$0xff] %vm1283, %v1248
      %1314 = vst.msk [vmem:[#allocation2 + $0xf0] sm:$0xff] %vm1283, %v1249
      %1315 = vst.msk [vmem:[#allocation2 + $0xf8] sm:$0xff] %vm1283, %v1250
      %1316 = vst.msk [vmem:[#allocation2 + $0x100] sm:$0xff] %vm1283, %v1251
      %1317 = vst.msk [vmem:[#allocation2 + $0x108] sm:$0xff] %vm1283, %v1252
      %1318 = vst.msk [vmem:[#allocation2 + $0x110] sm:$0xff] %vm1283, %v1253
      %1319 = vst.msk [vmem:[#allocation2 + $0x118] sm:$0xff] %vm1283, %v1254
      %1320 = vst.msk [vmem:[#allocation2 + $0x120] sm:$0xff] %vm1283, %v1255
      %1321 = vst.msk [vmem:[#allocation2 + $0x128] sm:$0xff] %vm1283, %v1256
      %1322 = vst.msk [vmem:[#allocation2 + $0x130] sm:$0xff] %vm1283, %v1257
      %1323 = vst.msk [vmem:[#allocation2 + $0x138] sm:$0xff] %vm1283, %v1258
      %1324 = vst.msk [vmem:[#allocation2 + $0x140] sm:$0xff] %vm1283, %v1259
      %1325 = vst.msk [vmem:[#allocation2 + $0x148] sm:$0xff] %vm1283, %v1260
      %1326 = vst.msk [vmem:[#allocation2 + $0x150] sm:$0xff] %vm1283, %v1261
      %1327 = vst.msk [vmem:[#allocation2 + $0x158] sm:$0xff] %vm1283, %v1262
      %1328 = vst.msk [vmem:[#allocation2 + $0x160] sm:$0xff] %vm1283, %v1263
      %1329 = vst.msk [vmem:[#allocation2 + $0x168] sm:$0xff] %vm1283, %v1264
      %1330 = vst.msk [vmem:[#allocation2 + $0x170] sm:$0xff] %vm1283, %v1265
      %1331 = vst.msk [vmem:[#allocation2 + $0x178] sm:$0xff] %vm1283, %v1266
      %1332 = vst.msk [vmem:[#allocation2 + $0x180] sm:$0xff] %vm1283, %v1267
      %1333 = vst.msk [vmem:[#allocation2 + $0x188] sm:$0xff] %vm1283, %v1268
      %1334 = vst.msk [vmem:[#allocation2 + $0x190] sm:$0xff] %vm1283, %v1269
      %1335 = vst.msk [vmem:[#allocation2 + $0x198] sm:$0xff] %vm1283, %v1270
      %1336 = vst.msk [vmem:[#allocation2 + $0x1a0] sm:$0xff] %vm1283, %v1271
      %1337 = vst.msk [vmem:[#allocation2 + $0x1a8] sm:$0xff] %vm1283, %v1272
      %1338 = vst.msk [vmem:[#allocation2 + $0x1b0] sm:$0xff] %vm1283, %v1273
      %1339 = vst.msk [vmem:[#allocation2 + $0x1b8] sm:$0xff] %vm1283, %v1274
      %1340 = vst.msk [vmem:[#allocation2 + $0x1c0] sm:$0xff] %vm1283, %v1275
      %1341 = vst.msk [vmem:[#allocation2 + $0x1c8] sm:$0xff] %vm1283, %v1276
      %1342 = vst.msk [vmem:[#allocation2 + $0x1d0] sm:$0xff] %vm1283, %v1277
      %1343 = vst.msk [vmem:[#allocation2 + $0x1d8] sm:$0xff] %vm1283, %v1278
      %1344 = vst.msk [vmem:[#allocation2 + $0x1e0] sm:$0xff] %vm1283, %v1279
      %1345 = vst.msk [vmem:[#allocation2 + $0x1e8] sm:$0xff] %vm1283, %v1280
      %1346 = vst.msk [vmem:[#allocation2 + $0x1f0] sm:$0xff] %vm1283, %v1281
      %1347 = vst.msk [vmem:[#allocation2 + $0x1f8] sm:$0xff] %vm1283, %v1282
      // Predicated region
      $region37: #{tpu_custom_call.1} parent=31 // pred_check
        %p1348 = pneg %p268
      $region38: #{tpu_custom_call.1} parent=31 // pred_check_branch
        %1350 = sbr.rel (%p1348) target = $region40
      $region39: #{tpu_custom_call.1} parent=31 // pred_region
        %v1351 = vld [vmem:[#allocation2] sm:$0xff]
        %v1352 = vld [vmem:[#allocation2 + $0x8] sm:$0xff]
        %v1353 = vld [vmem:[#allocation2 + $0x10] sm:$0xff]
        %v1354 = vld [vmem:[#allocation2 + $0x18] sm:$0xff]
        %v1355 = vld [vmem:[#allocation2 + $0x20] sm:$0xff]
        %v1356 = vld [vmem:[#allocation2 + $0x28] sm:$0xff]
        %v1357 = vld [vmem:[#allocation2 + $0x30] sm:$0xff]
        %v1358 = vld [vmem:[#allocation2 + $0x38] sm:$0xff]
        %v1359 = vld [vmem:[#allocation2 + $0x40] sm:$0xff]
        %v1360 = vld [vmem:[#allocation2 + $0x48] sm:$0xff]
        %v1361 = vld [vmem:[#allocation2 + $0x50] sm:$0xff]
        %v1362 = vld [vmem:[#allocation2 + $0x58] sm:$0xff]
        %v1363 = vld [vmem:[#allocation2 + $0x60] sm:$0xff]
        %v1364 = vld [vmem:[#allocation2 + $0x68] sm:$0xff]
        %v1365 = vld [vmem:[#allocation2 + $0x70] sm:$0xff]
        %v1366 = vld [vmem:[#allocation2 + $0x78] sm:$0xff]
        %v1367 = vld [vmem:[#allocation2 + $0x80] sm:$0xff]
        %v1368 = vld [vmem:[#allocation2 + $0x88] sm:$0xff]
        %v1369 = vld [vmem:[#allocation2 + $0x90] sm:$0xff]
        %v1370 = vld [vmem:[#allocation2 + $0x98] sm:$0xff]
        %v1371 = vld [vmem:[#allocation2 + $0xa0] sm:$0xff]
        %v1372 = vld [vmem:[#allocation2 + $0xa8] sm:$0xff]
        %v1373 = vld [vmem:[#allocation2 + $0xb0] sm:$0xff]
        %v1374 = vld [vmem:[#allocation2 + $0xb8] sm:$0xff]
        %v1375 = vld [vmem:[#allocation2 + $0xc0] sm:$0xff]
        %v1376 = vld [vmem:[#allocation2 + $0xc8] sm:$0xff]
        %v1377 = vld [vmem:[#allocation2 + $0xd0] sm:$0xff]
        %v1378 = vld [vmem:[#allocation2 + $0xd8] sm:$0xff]
        %v1379 = vld [vmem:[#allocation2 + $0xe0] sm:$0xff]
        %v1380 = vld [vmem:[#allocation2 + $0xe8] sm:$0xff]
        %v1381 = vld [vmem:[#allocation2 + $0xf0] sm:$0xff]
        %v1382 = vld [vmem:[#allocation2 + $0xf8] sm:$0xff]
        %v1383 = vld [vmem:[#allocation2 + $0x100] sm:$0xff]
        %v1384 = vld [vmem:[#allocation2 + $0x108] sm:$0xff]
        %v1385 = vld [vmem:[#allocation2 + $0x110] sm:$0xff]
        %v1386 = vld [vmem:[#allocation2 + $0x118] sm:$0xff]
        %v1387 = vld [vmem:[#allocation2 + $0x120] sm:$0xff]
        %v1388 = vld [vmem:[#allocation2 + $0x128] sm:$0xff]
        %v1389 = vld [vmem:[#allocation2 + $0x130] sm:$0xff]
        %v1390 = vld [vmem:[#allocation2 + $0x138] sm:$0xff]
        %v1391 = vld [vmem:[#allocation2 + $0x140] sm:$0xff]
        %v1392 = vld [vmem:[#allocation2 + $0x148] sm:$0xff]
        %v1393 = vld [vmem:[#allocation2 + $0x150] sm:$0xff]
        %v1394 = vld [vmem:[#allocation2 + $0x158] sm:$0xff]
        %v1395 = vld [vmem:[#allocation2 + $0x160] sm:$0xff]
        %v1396 = vld [vmem:[#allocation2 + $0x168] sm:$0xff]
        %v1397 = vld [vmem:[#allocation2 + $0x170] sm:$0xff]
        %v1398 = vld [vmem:[#allocation2 + $0x178] sm:$0xff]
        %v1399 = vld [vmem:[#allocation2 + $0x180] sm:$0xff]
        %v1400 = vld [vmem:[#allocation2 + $0x188] sm:$0xff]
        %v1401 = vld [vmem:[#allocation2 + $0x190] sm:$0xff]
        %v1402 = vld [vmem:[#allocation2 + $0x198] sm:$0xff]
        %v1403 = vld [vmem:[#allocation2 + $0x1a0] sm:$0xff]
        %v1404 = vld [vmem:[#allocation2 + $0x1a8] sm:$0xff]
        %v1405 = vld [vmem:[#allocation2 + $0x1b0] sm:$0xff]
        %v1406 = vld [vmem:[#allocation2 + $0x1b8] sm:$0xff]
        %v1407 = vld [vmem:[#allocation2 + $0x1c0] sm:$0xff]
        %v1408 = vld [vmem:[#allocation2 + $0x1c8] sm:$0xff]
        %v1409 = vld [vmem:[#allocation2 + $0x1d0] sm:$0xff]
        %v1410 = vld [vmem:[#allocation2 + $0x1d8] sm:$0xff]
        %v1411 = vld [vmem:[#allocation2 + $0x1e0] sm:$0xff]
        %v1412 = vld [vmem:[#allocation2 + $0x1e8] sm:$0xff]
        %v1413 = vld [vmem:[#allocation2 + $0x1f0] sm:$0xff]
        %v1414 = vld [vmem:[#allocation2 + $0x1f8] sm:$0xff]
        %v1415 = vld [vmem:[%s257] sm:$0x1]
        %v1417 = vlaneseq
        %v1418 = vshrl.u32 %v1417, 7
        %v1419 = vsub.s32 0, %v1418
        %v1420 = vrot.slane %v1415, %v1419
        %v1422 = vadd.f32 %v1351, %v1420
        %v1423 = vadd.f32 %v1352, %v1420
        %v1424 = vadd.f32 %v1353, %v1420
        %v1425 = vadd.f32 %v1354, %v1420
        %v1426 = vadd.f32 %v1355, %v1420
        %v1427 = vadd.f32 %v1356, %v1420
        %v1428 = vadd.f32 %v1357, %v1420
        %v1429 = vadd.f32 %v1358, %v1420
        %v1430 = vadd.f32 %v1359, %v1420
        %v1431 = vadd.f32 %v1360, %v1420
        %v1432 = vadd.f32 %v1361, %v1420
        %v1433 = vadd.f32 %v1362, %v1420
        %v1434 = vadd.f32 %v1363, %v1420
        %v1435 = vadd.f32 %v1364, %v1420
        %v1436 = vadd.f32 %v1365, %v1420
        %v1437 = vadd.f32 %v1366, %v1420
        %v1438 = vadd.f32 %v1367, %v1420
        %v1439 = vadd.f32 %v1368, %v1420
        %v1440 = vadd.f32 %v1369, %v1420
        %v1441 = vadd.f32 %v1370, %v1420
        %v1442 = vadd.f32 %v1371, %v1420
        %v1443 = vadd.f32 %v1372, %v1420
        %v1444 = vadd.f32 %v1373, %v1420
        %v1445 = vadd.f32 %v1374, %v1420
        %v1446 = vadd.f32 %v1375, %v1420
        %v1447 = vadd.f32 %v1376, %v1420
        %v1448 = vadd.f32 %v1377, %v1420
        %v1449 = vadd.f32 %v1378, %v1420
        %v1450 = vadd.f32 %v1379, %v1420
        %v1451 = vadd.f32 %v1380, %v1420
        %v1452 = vadd.f32 %v1381, %v1420
        %v1453 = vadd.f32 %v1382, %v1420
        %v1454 = vadd.f32 %v1383, %v1420
        %v1455 = vadd.f32 %v1384, %v1420
        %v1456 = vadd.f32 %v1385, %v1420
        %v1457 = vadd.f32 %v1386, %v1420
        %v1458 = vadd.f32 %v1387, %v1420
        %v1459 = vadd.f32 %v1388, %v1420
        %v1460 = vadd.f32 %v1389, %v1420
        %v1461 = vadd.f32 %v1390, %v1420
        %v1462 = vadd.f32 %v1391, %v1420
        %v1463 = vadd.f32 %v1392, %v1420
        %v1464 = vadd.f32 %v1393, %v1420
        %v1465 = vadd.f32 %v1394, %v1420
        %v1466 = vadd.f32 %v1395, %v1420
        %v1467 = vadd.f32 %v1396, %v1420
        %v1468 = vadd.f32 %v1397, %v1420
        %v1469 = vadd.f32 %v1398, %v1420
        %v1470 = vadd.f32 %v1399, %v1420
        %v1471 = vadd.f32 %v1400, %v1420
        %v1472 = vadd.f32 %v1401, %v1420
        %v1473 = vadd.f32 %v1402, %v1420
        %v1474 = vadd.f32 %v1403, %v1420
        %v1475 = vadd.f32 %v1404, %v1420
        %v1476 = vadd.f32 %v1405, %v1420
        %v1477 = vadd.f32 %v1406, %v1420
        %v1478 = vadd.f32 %v1407, %v1420
        %v1479 = vadd.f32 %v1408, %v1420
        %v1480 = vadd.f32 %v1409, %v1420
        %v1481 = vadd.f32 %v1410, %v1420
        %v1482 = vadd.f32 %v1411, %v1420
        %v1483 = vadd.f32 %v1412, %v1420
        %v1484 = vadd.f32 %v1413, %v1420
        %v1485 = vadd.f32 %v1414, %v1420
        %v1486 = vmax.f32 %v1422, 0.0
        %v1487 = vmax.f32 %v1423, 0.0
        %v1488 = vmax.f32 %v1424, 0.0
        %v1489 = vmax.f32 %v1425, 0.0
        %v1490 = vmax.f32 %v1426, 0.0
        %v1491 = vmax.f32 %v1427, 0.0
        %v1492 = vmax.f32 %v1428, 0.0
        %v1493 = vmax.f32 %v1429, 0.0
        %v1494 = vmax.f32 %v1430, 0.0
        %v1495 = vmax.f32 %v1431, 0.0
        %v1496 = vmax.f32 %v1432, 0.0
        %v1497 = vmax.f32 %v1433, 0.0
        %v1498 = vmax.f32 %v1434, 0.0
        %v1499 = vmax.f32 %v1435, 0.0
        %v1500 = vmax.f32 %v1436, 0.0
        %v1501 = vmax.f32 %v1437, 0.0
        %v1502 = vmax.f32 %v1438, 0.0
        %v1503 = vmax.f32 %v1439, 0.0
        %v1504 = vmax.f32 %v1440, 0.0
        %v1505 = vmax.f32 %v1441, 0.0
        %v1506 = vmax.f32 %v1442, 0.0
        %v1507 = vmax.f32 %v1443, 0.0
        %v1508 = vmax.f32 %v1444, 0.0
        %v1509 = vmax.f32 %v1445, 0.0
        %v1510 = vmax.f32 %v1446, 0.0
        %v1511 = vmax.f32 %v1447, 0.0
        %v1512 = vmax.f32 %v1448, 0.0
        %v1513 = vmax.f32 %v1449, 0.0
        %v1514 = vmax.f32 %v1450, 0.0
        %v1515 = vmax.f32 %v1451, 0.0
        %v1516 = vmax.f32 %v1452, 0.0
        %v1517 = vmax.f32 %v1453, 0.0
        %v1518 = vmax.f32 %v1454, 0.0
        %v1519 = vmax.f32 %v1455, 0.0
        %v1520 = vmax.f32 %v1456, 0.0
        %v1521 = vmax.f32 %v1457, 0.0
        %v1522 = vmax.f32 %v1458, 0.0
        %v1523 = vmax.f32 %v1459, 0.0
        %v1524 = vmax.f32 %v1460, 0.0
        %v1525 = vmax.f32 %v1461, 0.0
        %v1526 = vmax.f32 %v1462, 0.0
        %v1527 = vmax.f32 %v1463, 0.0
        %v1528 = vmax.f32 %v1464, 0.0
        %v1529 = vmax.f32 %v1465, 0.0
        %v1530 = vmax.f32 %v1466, 0.0
        %v1531 = vmax.f32 %v1467, 0.0
        %v1532 = vmax.f32 %v1468, 0.0
        %v1533 = vmax.f32 %v1469, 0.0
        %v1534 = vmax.f32 %v1470, 0.0
        %v1535 = vmax.f32 %v1471, 0.0
        %v1536 = vmax.f32 %v1472, 0.0
        %v1537 = vmax.f32 %v1473, 0.0
        %v1538 = vmax.f32 %v1474, 0.0
        %v1539 = vmax.f32 %v1475, 0.0
        %v1540 = vmax.f32 %v1476, 0.0
        %v1541 = vmax.f32 %v1477, 0.0
        %v1542 = vmax.f32 %v1478, 0.0
        %v1543 = vmax.f32 %v1479, 0.0
        %v1544 = vmax.f32 %v1480, 0.0
        %v1545 = vmax.f32 %v1481, 0.0
        %v1546 = vmax.f32 %v1482, 0.0
        %v1547 = vmax.f32 %v1483, 0.0
        %v1548 = vmax.f32 %v1484, 0.0
        %v1549 = vmax.f32 %v1485, 0.0
        %v1550 = vpack.c.bf16 %v1487, %v1486
        %v1551 = vpack.c.bf16 %v1489, %v1488
        %v1552 = vpack.c.bf16 %v1491, %v1490
        %v1553 = vpack.c.bf16 %v1493, %v1492
        %v1554 = vpack.c.bf16 %v1495, %v1494
        %v1555 = vpack.c.bf16 %v1497, %v1496
        %v1556 = vpack.c.bf16 %v1499, %v1498
        %v1557 = vpack.c.bf16 %v1501, %v1500
        %v1558 = vpack.c.bf16 %v1503, %v1502
        %v1559 = vpack.c.bf16 %v1505, %v1504
        %v1560 = vpack.c.bf16 %v1507, %v1506
        %v1561 = vpack.c.bf16 %v1509, %v1508
        %v1562 = vpack.c.bf16 %v1511, %v1510
        %v1563 = vpack.c.bf16 %v1513, %v1512
        %v1564 = vpack.c.bf16 %v1515, %v1514
        %v1565 = vpack.c.bf16 %v1517, %v1516
        %v1566 = vpack.c.bf16 %v1519, %v1518
        %v1567 = vpack.c.bf16 %v1521, %v1520
        %v1568 = vpack.c.bf16 %v1523, %v1522
        %v1569 = vpack.c.bf16 %v1525, %v1524
        %v1570 = vpack.c.bf16 %v1527, %v1526
        %v1571 = vpack.c.bf16 %v1529, %v1528
        %v1572 = vpack.c.bf16 %v1531, %v1530
        %v1573 = vpack.c.bf16 %v1533, %v1532
        %v1574 = vpack.c.bf16 %v1535, %v1534
        %v1575 = vpack.c.bf16 %v1537, %v1536
        %v1576 = vpack.c.bf16 %v1539, %v1538
        %v1577 = vpack.c.bf16 %v1541, %v1540
        %v1578 = vpack.c.bf16 %v1543, %v1542
        %v1579 = vpack.c.bf16 %v1545, %v1544
        %v1580 = vpack.c.bf16 %v1547, %v1546
        %v1581 = vpack.c.bf16 %v1549, %v1548
        %v1614 = vunpack.c.l.b16 %v1550
        %v1615 = vunpack.c.h.b16 %v1550
        %v1616 = vunpack.c.l.b16 %v1551
        %v1617 = vunpack.c.h.b16 %v1551
        %v1618 = vunpack.c.l.b16 %v1552
        %v1619 = vunpack.c.h.b16 %v1552
        %v1620 = vunpack.c.l.b16 %v1553
        %v1621 = vunpack.c.h.b16 %v1553
        %v1622 = vunpack.c.l.b16 %v1554
        %v1623 = vunpack.c.h.b16 %v1554
        %v1624 = vunpack.c.l.b16 %v1555
        %v1625 = vunpack.c.h.b16 %v1555
        %v1626 = vunpack.c.l.b16 %v1556
        %v1627 = vunpack.c.h.b16 %v1556
        %v1628 = vunpack.c.l.b16 %v1557
        %v1629 = vunpack.c.h.b16 %v1557
        %v1630 = vunpack.c.l.b16 %v1558
        %v1631 = vunpack.c.h.b16 %v1558
        %v1632 = vunpack.c.l.b16 %v1559
        %v1633 = vunpack.c.h.b16 %v1559
        %v1634 = vunpack.c.l.b16 %v1560
        %v1635 = vunpack.c.h.b16 %v1560
        %v1636 = vunpack.c.l.b16 %v1561
        %v1637 = vunpack.c.h.b16 %v1561
        %v1638 = vunpack.c.l.b16 %v1562
        %v1639 = vunpack.c.h.b16 %v1562
        %v1640 = vunpack.c.l.b16 %v1563
        %v1641 = vunpack.c.h.b16 %v1563
        %v1642 = vunpack.c.l.b16 %v1564
        %v1643 = vunpack.c.h.b16 %v1564
        %v1644 = vunpack.c.l.b16 %v1565
        %v1645 = vunpack.c.h.b16 %v1565
        %v1646 = vunpack.c.l.b16 %v1566
        %v1647 = vunpack.c.h.b16 %v1566
        %v1648 = vunpack.c.l.b16 %v1567
        %v1649 = vunpack.c.h.b16 %v1567
        %v1650 = vunpack.c.l.b16 %v1568
        %v1651 = vunpack.c.h.b16 %v1568
        %v1652 = vunpack.c.l.b16 %v1569
        %v1653 = vunpack.c.h.b16 %v1569
        %v1654 = vunpack.c.l.b16 %v1570
        %v1655 = vunpack.c.h.b16 %v1570
        %v1656 = vunpack.c.l.b16 %v1571
        %v1657 = vunpack.c.h.b16 %v1571
        %v1658 = vunpack.c.l.b16 %v1572
        %v1659 = vunpack.c.h.b16 %v1572
        %v1660 = vunpack.c.l.b16 %v1573
        %v1661 = vunpack.c.h.b16 %v1573
        %v1662 = vunpack.c.l.b16 %v1574
        %v1663 = vunpack.c.h.b16 %v1574
        %v1664 = vunpack.c.l.b16 %v1575
        %v1665 = vunpack.c.h.b16 %v1575
        %v1666 = vunpack.c.l.b16 %v1576
        %v1667 = vunpack.c.h.b16 %v1576
        %v1668 = vunpack.c.l.b16 %v1577
        %v1669 = vunpack.c.h.b16 %v1577
        %v1670 = vunpack.c.l.b16 %v1578
        %v1671 = vunpack.c.h.b16 %v1578
        %v1672 = vunpack.c.l.b16 %v1579
        %v1673 = vunpack.c.h.b16 %v1579
        %v1674 = vunpack.c.l.b16 %v1580
        %v1675 = vunpack.c.h.b16 %v1580
        %v1676 = vunpack.c.l.b16 %v1581
        %v1677 = vunpack.c.h.b16 %v1581
        %v1678 = vpack.c.b16 %v1614, %v1614
        %v1679 = vpack.c.b16 %v1615, %v1615
        %v1680 = vpack.c.b16 %v1616, %v1616
        %v1681 = vpack.c.b16 %v1617, %v1617
        %v1682 = vpack.c.b16 %v1618, %v1618
        %v1683 = vpack.c.b16 %v1619, %v1619
        %v1684 = vpack.c.b16 %v1620, %v1620
        %v1685 = vpack.c.b16 %v1621, %v1621
        %v1686 = vpack.c.b16 %v1622, %v1622
        %v1687 = vpack.c.b16 %v1623, %v1623
        %v1688 = vpack.c.b16 %v1624, %v1624
        %v1689 = vpack.c.b16 %v1625, %v1625
        %v1690 = vpack.c.b16 %v1626, %v1626
        %v1691 = vpack.c.b16 %v1627, %v1627
        %v1692 = vpack.c.b16 %v1628, %v1628
        %v1693 = vpack.c.b16 %v1629, %v1629
        %v1694 = vpack.c.b16 %v1630, %v1630
        %v1695 = vpack.c.b16 %v1631, %v1631
        %v1696 = vpack.c.b16 %v1632, %v1632
        %v1697 = vpack.c.b16 %v1633, %v1633
        %v1698 = vpack.c.b16 %v1634, %v1634
        %v1699 = vpack.c.b16 %v1635, %v1635
        %v1700 = vpack.c.b16 %v1636, %v1636
        %v1701 = vpack.c.b16 %v1637, %v1637
        %v1702 = vpack.c.b16 %v1638, %v1638
        %v1703 = vpack.c.b16 %v1639, %v1639
        %v1704 = vpack.c.b16 %v1640, %v1640
        %v1705 = vpack.c.b16 %v1641, %v1641
        %v1706 = vpack.c.b16 %v1642, %v1642
        %v1707 = vpack.c.b16 %v1643, %v1643
        %v1708 = vpack.c.b16 %v1644, %v1644
        %v1709 = vpack.c.b16 %v1645, %v1645
        %v1710 = vpack.c.b16 %v1646, %v1646
        %v1711 = vpack.c.b16 %v1647, %v1647
        %v1712 = vpack.c.b16 %v1648, %v1648
        %v1713 = vpack.c.b16 %v1649, %v1649
        %v1714 = vpack.c.b16 %v1650, %v1650
        %v1715 = vpack.c.b16 %v1651, %v1651
        %v1716 = vpack.c.b16 %v1652, %v1652
        %v1717 = vpack.c.b16 %v1653, %v1653
        %v1718 = vpack.c.b16 %v1654, %v1654
        %v1719 = vpack.c.b16 %v1655, %v1655
        %v1720 = vpack.c.b16 %v1656, %v1656
        %v1721 = vpack.c.b16 %v1657, %v1657
        %v1722 = vpack.c.b16 %v1658, %v1658
        %v1723 = vpack.c.b16 %v1659, %v1659
        %v1724 = vpack.c.b16 %v1660, %v1660
        %v1725 = vpack.c.b16 %v1661, %v1661
        %v1726 = vpack.c.b16 %v1662, %v1662
        %v1727 = vpack.c.b16 %v1663, %v1663
        %v1728 = vpack.c.b16 %v1664, %v1664
        %v1729 = vpack.c.b16 %v1665, %v1665
        %v1730 = vpack.c.b16 %v1666, %v1666
        %v1731 = vpack.c.b16 %v1667, %v1667
        %v1732 = vpack.c.b16 %v1668, %v1668
        %v1733 = vpack.c.b16 %v1669, %v1669
        %v1734 = vpack.c.b16 %v1670, %v1670
        %v1735 = vpack.c.b16 %v1671, %v1671
        %v1736 = vpack.c.b16 %v1672, %v1672
        %v1737 = vpack.c.b16 %v1673, %v1673
        %v1738 = vpack.c.b16 %v1674, %v1674
        %v1739 = vpack.c.b16 %v1675, %v1675
        %v1740 = vpack.c.b16 %v1676, %v1676
        %v1741 = vpack.c.b16 %v1677, %v1677
        %vm1806 = vcmask 519168
        %1807 = vst.msk [vmem:[%s265] sm:$0xf] %vm1806, %v1678
        %1808 = vst.msk [vmem:[%s265 + $0x4] sm:$0xf] %vm1806, %v1679
        %1809 = vst.msk [vmem:[%s265 + $0x8] sm:$0xf] %vm1806, %v1680
        %1810 = vst.msk [vmem:[%s265 + $0xc] sm:$0xf] %vm1806, %v1681
        %1811 = vst.msk [vmem:[%s265 + $0x10] sm:$0xf] %vm1806, %v1682
        %1812 = vst.msk [vmem:[%s265 + $0x14] sm:$0xf] %vm1806, %v1683
        %1813 = vst.msk [vmem:[%s265 + $0x18] sm:$0xf] %vm1806, %v1684
        %1814 = vst.msk [vmem:[%s265 + $0x1c] sm:$0xf] %vm1806, %v1685
        %1815 = vst.msk [vmem:[%s265 + $0x20] sm:$0xf] %vm1806, %v1686
        %1816 = vst.msk [vmem:[%s265 + $0x24] sm:$0xf] %vm1806, %v1687
        %1817 = vst.msk [vmem:[%s265 + $0x28] sm:$0xf] %vm1806, %v1688
        %1818 = vst.msk [vmem:[%s265 + $0x2c] sm:$0xf] %vm1806, %v1689
        %1819 = vst.msk [vmem:[%s265 + $0x30] sm:$0xf] %vm1806, %v1690
        %1820 = vst.msk [vmem:[%s265 + $0x34] sm:$0xf] %vm1806, %v1691
        %1821 = vst.msk [vmem:[%s265 + $0x38] sm:$0xf] %vm1806, %v1692
        %1822 = vst.msk [vmem:[%s265 + $0x3c] sm:$0xf] %vm1806, %v1693
        %1823 = vst.msk [vmem:[%s265 + $0x40] sm:$0xf] %vm1806, %v1694
        %1824 = vst.msk [vmem:[%s265 + $0x44] sm:$0xf] %vm1806, %v1695
        %1825 = vst.msk [vmem:[%s265 + $0x48] sm:$0xf] %vm1806, %v1696
        %1826 = vst.msk [vmem:[%s265 + $0x4c] sm:$0xf] %vm1806, %v1697
        %1827 = vst.msk [vmem:[%s265 + $0x50] sm:$0xf] %vm1806, %v1698
        %1828 = vst.msk [vmem:[%s265 + $0x54] sm:$0xf] %vm1806, %v1699
        %1829 = vst.msk [vmem:[%s265 + $0x58] sm:$0xf] %vm1806, %v1700
        %1830 = vst.msk [vmem:[%s265 + $0x5c] sm:$0xf] %vm1806, %v1701
        %1831 = vst.msk [vmem:[%s265 + $0x60] sm:$0xf] %vm1806, %v1702
        %1832 = vst.msk [vmem:[%s265 + $0x64] sm:$0xf] %vm1806, %v1703
        %1833 = vst.msk [vmem:[%s265 + $0x68] sm:$0xf] %vm1806, %v1704
        %1834 = vst.msk [vmem:[%s265 + $0x6c] sm:$0xf] %vm1806, %v1705
        %1835 = vst.msk [vmem:[%s265 + $0x70] sm:$0xf] %vm1806, %v1706
        %1836 = vst.msk [vmem:[%s265 + $0x74] sm:$0xf] %vm1806, %v1707
        %1837 = vst.msk [vmem:[%s265 + $0x78] sm:$0xf] %vm1806, %v1708
        %1838 = vst.msk [vmem:[%s265 + $0x7c] sm:$0xf] %vm1806, %v1709
        %1839 = vst.msk [vmem:[%s265 + $0x80] sm:$0xf] %vm1806, %v1710
        %1840 = vst.msk [vmem:[%s265 + $0x84] sm:$0xf] %vm1806, %v1711
        %1841 = vst.msk [vmem:[%s265 + $0x88] sm:$0xf] %vm1806, %v1712
        %1842 = vst.msk [vmem:[%s265 + $0x8c] sm:$0xf] %vm1806, %v1713
        %1843 = vst.msk [vmem:[%s265 + $0x90] sm:$0xf] %vm1806, %v1714
        %1844 = vst.msk [vmem:[%s265 + $0x94] sm:$0xf] %vm1806, %v1715
        %1845 = vst.msk [vmem:[%s265 + $0x98] sm:$0xf] %vm1806, %v1716
        %1846 = vst.msk [vmem:[%s265 + $0x9c] sm:$0xf] %vm1806, %v1717
        %1847 = vst.msk [vmem:[%s265 + $0xa0] sm:$0xf] %vm1806, %v1718
        %1848 = vst.msk [vmem:[%s265 + $0xa4] sm:$0xf] %vm1806, %v1719
        %1849 = vst.msk [vmem:[%s265 + $0xa8] sm:$0xf] %vm1806, %v1720
        %1850 = vst.msk [vmem:[%s265 + $0xac] sm:$0xf] %vm1806, %v1721
        %1851 = vst.msk [vmem:[%s265 + $0xb0] sm:$0xf] %vm1806, %v1722
        %1852 = vst.msk [vmem:[%s265 + $0xb4] sm:$0xf] %vm1806, %v1723
        %1853 = vst.msk [vmem:[%s265 + $0xb8] sm:$0xf] %vm1806, %v1724
        %1854 = vst.msk [vmem:[%s265 + $0xbc] sm:$0xf] %vm1806, %v1725
        %1855 = vst.msk [vmem:[%s265 + $0xc0] sm:$0xf] %vm1806, %v1726
        %1856 = vst.msk [vmem:[%s265 + $0xc4] sm:$0xf] %vm1806, %v1727
        %1857 = vst.msk [vmem:[%s265 + $0xc8] sm:$0xf] %vm1806, %v1728
        %1858 = vst.msk [vmem:[%s265 + $0xcc] sm:$0xf] %vm1806, %v1729
        %1859 = vst.msk [vmem:[%s265 + $0xd0] sm:$0xf] %vm1806, %v1730
        %1860 = vst.msk [vmem:[%s265 + $0xd4] sm:$0xf] %vm1806, %v1731
        %1861 = vst.msk [vmem:[%s265 + $0xd8] sm:$0xf] %vm1806, %v1732
        %1862 = vst.msk [vmem:[%s265 + $0xdc] sm:$0xf] %vm1806, %v1733
        %1863 = vst.msk [vmem:[%s265 + $0xe0] sm:$0xf] %vm1806, %v1734
        %1864 = vst.msk [vmem:[%s265 + $0xe4] sm:$0xf] %vm1806, %v1735
        %1865 = vst.msk [vmem:[%s265 + $0xe8] sm:$0xf] %vm1806, %v1736
        %1866 = vst.msk [vmem:[%s265 + $0xec] sm:$0xf] %vm1806, %v1737
        %1867 = vst.msk [vmem:[%s265 + $0xf0] sm:$0xf] %vm1806, %v1738
        %1868 = vst.msk [vmem:[%s265 + $0xf4] sm:$0xf] %vm1806, %v1739
        %1869 = vst.msk [vmem:[%s265 + $0xf8] sm:$0xf] %vm1806, %v1740
        %1870 = vst.msk [vmem:[%s265 + $0xfc] sm:$0xf] %vm1806, %v1741
      $region40: #{tpu_custom_call.1} parent=31 // pred_fallthru
        _
      %s1871 = smul.u32 64, %s19
      %p1872 = scmp.lt.s32.totalorder %s1871, 127
      %s1873 = scalar_select %p1872, %s1871, 127
      %p1874 = scmp.lt.s32.totalorder %s20, 0
      %s1875 = scalar_select %p1874, %s20, 0
      %s1876 = sadd.s32 %s1875, %s1873
      %s1877 = smul.addr %s1876, 4
      %s1878 = scalar_lea.vmem %s3, %s1877
      // Predicated region
      $region41: #{tpu_custom_call.1} parent=31 // pred_check
        %p1879 = pneg %p135
      $region42: #{tpu_custom_call.1} parent=31 // pred_check_branch
        %1881 = sbr.rel (%p1879) target = $region44
      $region43: #{tpu_custom_call.1} parent=31 // pred_region
        %s1882 = smul.u32 64, %s19
      $region44: #{tpu_custom_call.1} parent=31 // pred_fallthru
        _
    $region32: #{tpu_custom_call.1} parent=5 // pred_fallthru
      _
    %p1883 = scmp.le.s32.totalorder 2, %s9
    // Predicated region
    $region45: #{tpu_custom_call.1} parent=5 // pred_check
      %p1884 = pneg %p1883
    $region46: #{tpu_custom_call.1} parent=5 // pred_check_branch
      %1886 = sbr.rel (%p1884) target = $region48
    $region47: #{tpu_custom_call.1} parent=5 // pred_region
      %s1887 = ssub.s32 %s9, 2
      // Predicated region
      $region49: #{tpu_custom_call.1} parent=47 // pred_check
        %p1888 = pneg %p141
      $region50: #{tpu_custom_call.1} parent=47 // pred_check_branch
        %1890 = sbr.rel (%p1888) target = $region52
      $region51: #{tpu_custom_call.1} parent=47 // pred_region
        %s1891 = smul.u32 64, %s22
        %p1892 = scmp.lt.s32.totalorder %s1891, 127
        %s1893 = scalar_select %p1892, %s1891, 127
        %p1894 = scmp.lt.s32.totalorder %s23, 0
        %s1895 = scalar_select %p1894, %s23, 0
        %s1896 = sadd.s32 %s1895, %s1893
        %s1897 = smul.addr %s1896, 4
        %s1898 = scalar_lea.vmem %s3, %s1897
      $region52: #{tpu_custom_call.1} parent=47 // pred_fallthru
        _
    $region48: #{tpu_custom_call.1} parent=5 // pred_fallthru
      _
  $region6: #{tpu_custom_call.1} parent=0 // loop_footer
    %s13 = sadd.s32 1, %s9
  $region7: #{tpu_custom_call.1} parent=0 // loop_footer_branch
    %8 = sbr.rel target = $region3
  $region8: #{tpu_custom_call.1} parent=0 // loop_exit
    _

</llo_original>
